<compile_context>
chip_gen: v7x
topology: tpu7x:2x2x1
jax: 0.10.0
libtpu: 0.0.40
codegen_flags: <defaults>
</compile_context>

<pallas_src>
import math

import jax
import jax.numpy as jnp
from jax.experimental import pallas as pl
from jax.experimental.pallas import tpu as pltpu


def _epiconv_kernel(x_ref, w1_ref, w2_ref, o_ref):
    """Fused conv1(angRes x angRes over full v) -> LeakyReLU -> 1x1 conv -> LeakyReLU.

    x_ref : (tn, W_pad, K0)     bf16, width-padded input rows, K0 = c*angRes (ci, kv)
    w1_ref: (angRes, Cout, K0)  f32,  conv1 weight, kw-tap major
    w2_ref: (C2, Cout)          f32,  conv2 (1x1) weight
    o_ref : (C2, tn * W_out)    f32,  transposed (lane-dense) output
    """
    tn, w_pad, k0 = x_ref.shape
    ang, cout, _ = w1_ref.shape
    c2 = w2_ref.shape[0]
    w_out = w_pad - ang + 1
    m_tile = tn * w_out
    assert o_ref.shape == (c2, m_tile)            # trace-time sanity check

    # Load the whole padded-width tile once; upcast once (accumulation in f32).
    x = x_ref[...].astype(jnp.float32)            # (tn, W_pad, K0)

    # conv1 = sum over angRes kw-taps of small matmuls (in-kernel im2col).
    # Best layout efficiency when W_out % 8 == 0 (cheap leading-dim reshape).
    y1t = None
    for kw in range(ang):                         # static unroll over taps
        a_kw = x[:, kw:kw + w_out, :].reshape(m_tile, k0)
        # (Cout, K0) contracted with (m_tile, K0) on K0 -> (Cout, m_tile)
        part = jax.lax.dot_general(
            w1_ref[kw], a_kw, (((1,), (1,)), ((), ())),
            preferred_element_type=jnp.float32)
        y1t = part if y1t is None else y1t + part
    y1t = jnp.where(y1t >= 0, y1t, 0.1 * y1t)     # LeakyReLU(0.1)

    # 1x1 conv2 as a plain matmul in transposed form: (C2, Cout) @ (Cout, m_tile)
    y2t = jnp.dot(w2_ref[...], y1t, preferred_element_type=jnp.float32)
    y2t = jnp.where(y2t >= 0, y2t, 0.1 * y2t)     # LeakyReLU(0.1)

    o_ref[...] = y2t.astype(o_ref.dtype)          # lane-dense store


def _choose_row_tile(n_rows, w_out, target_lanes):
    """Pick tn (rows of N per grid step) so tn*W_out is a multiple of 128
    (lane-dense output blocks), the block is ~target_lanes wide, and the grid
    keeps >= 2 blocks when possible (both v7x TensorCores get work)."""
    unit = 128 // math.gcd(w_out, 128)            # tn granularity for 128-lane blocks
    tn = max(unit, (max(1, target_lanes // w_out) // unit) * unit)
    # cap so that two blocks suffice to cover all rows
    cap_two = (((n_rows + 1) // 2 + unit - 1) // unit) * unit
    return max(unit, min(tn, cap_two))


def epiconv_forward(x, weight1, weight2, angRes, *, target_lanes=2048,
                    stream_dtype=jnp.bfloat16):
    """EpiConv.forward.

    x       : (b, u, v, c, h, w) float32, u == v == angRes
    weight1 : (Cout, Cin, angRes, angRes)   conv1, bias=False
    weight2 : (angRes*Cout, Cout, 1, 1)     conv2 (1x1), bias=False
    returns : (b, u, angRes, Cout, h, W_out)  (W_out == w for odd angRes)
    """
    b, u, v, c, h, w = x.shape
    assert v == angRes, "EpiConv assumes the v axis equals angRes"
    Cout = weight1.shape[0]
    C2 = weight2.shape[0]
    pad = angRes // 2
    W_pad = w + 2 * pad
    W_out = W_pad - angRes + 1
    K0 = c * angRes
    N = b * u * h

    # Layout glue: 'b u v c h w' -> X[(b u h), W_pad, (c v)], width zero-padded.
    xp = jnp.pad(x, ((0, 0),) * 5 + ((pad, pad),))
    X = jnp.transpose(xp, (0, 1, 4, 5, 3, 2)).reshape(N, W_pad, K0)
    X = X.astype(stream_dtype)                    # bf16 stream: halves HBM read

    # Row-tile selection (lane-dense output, >=2 grid blocks when possible).
    tn = _choose_row_tile(N, W_out, target_lanes)
    N_pad = ((N + tn - 1) // tn) * tn
    if N_pad != N:
        X = jnp.pad(X, ((0, N_pad - N), (0, 0), (0, 0)))
    grid = N_pad // tn
    m_tile = tn * W_out
    M_pad = N_pad * W_out

    # Weights: (Cout, ci, kv, kw) -> (kw, Cout, ci*kv); (C2, Cout, 1, 1) -> (C2, Cout)
    w1t = jnp.transpose(weight1, (3, 0, 1, 2)).reshape(angRes, Cout, K0)
    w1t = w1t.astype(jnp.float32)
    w2t = weight2.reshape(C2, Cout).astype(jnp.float32)

    flops = 2 * M_pad * (K0 * angRes) * Cout + 2 * M_pad * Cout * C2
    bytes_accessed = int(X.size) * X.dtype.itemsize + M_pad * C2 * 4 \
        + int(w1t.size) * 4 + int(w2t.size) * 4

    out_t = pl.pallas_call(
        _epiconv_kernel,
        out_shape=jax.ShapeDtypeStruct((C2, M_pad), jnp.float32),
        grid_spec=pltpu.PrefetchScalarGridSpec(
            num_scalar_prefetch=0,
            grid=(grid,),
            in_specs=[
                pl.BlockSpec((tn, W_pad, K0), lambda i: (i, 0, 0)),
                pl.BlockSpec((angRes, Cout, K0), lambda i: (0, 0, 0)),
                pl.BlockSpec((C2, Cout), lambda i: (0, 0)),
            ],
            out_specs=pl.BlockSpec((C2, m_tile), lambda i: (0, i)),
        ),
        compiler_params=pltpu.CompilerParams(
            dimension_semantics=("parallel",)),
        cost_estimate=pl.CostEstimate(
            flops=flops, transcendentals=0, bytes_accessed=bytes_accessed),
    )(X, w1t, w2t)

    # Drop N padding, undo PixelShuffle1D (C2 index = co*angRes + a) and
    # rearrange '(b u h) c v w -> b u v c h w'.
    out = out_t[:, :N * W_out]
    out = out.reshape(Cout, angRes, b, u, h, W_out)
    out = jnp.transpose(out, (2, 3, 1, 0, 4, 5))  # (b, u, angRes, Cout, h, W_out)
    return out


def epiconv_reference(x, weight1, weight2, angRes):
    """Pure-JAX reference (lax.conv) mirroring the PyTorch module."""
    b, u, v, c, h, w = x.shape
    Cout = weight1.shape[0]
    pad = angRes // 2
    inp = jnp.transpose(x, (0, 1, 4, 3, 2, 5)).reshape(b * u * h, c, v, w)
    o1 = jax.lax.conv_general_dilated(
        inp, weight1, window_strides=(1, 1), padding=((0, 0), (pad, pad)),
        dimension_numbers=("NCHW", "OIHW", "NCHW"))
    o1 = jnp.where(o1 >= 0, o1, 0.1 * o1)
    o2 = jax.lax.conv_general_dilated(
        o1, weight2, window_strides=(1, 1), padding=((0, 0), (0, 0)),
        dimension_numbers=("NCHW", "OIHW", "NCHW"))
    o2 = jnp.where(o2 >= 0, o2, 0.1 * o2)
    N, fc, oh, W_out = o2.shape
    o2 = o2.reshape(N, Cout, angRes * oh, W_out)          # PixelShuffle1D
    out = o2.reshape(b, u, h, Cout, angRes, W_out)
    return jnp.transpose(out, (0, 1, 4, 3, 2, 5))


if __name__ == "__main__":
    angRes, channel_in, channel_out = 3, 4, 8
    b, h, w = 2, 8, 16

    key = jax.random.PRNGKey(0)
    kx, k1, k2 = jax.random.split(key, 3)
    x = jax.random.normal(kx, (b, angRes, angRes, channel_in, h, w), jnp.float32)
    # deterministic synthetic weights (no checkpoint load)
    weight1 = 0.1 * jax.random.normal(
        k1, (channel_out, channel_in, angRes, angRes), jnp.float32)
    weight2 = 0.1 * jax.random.normal(
        k2, (angRes * channel_out, channel_out, 1, 1), jnp.float32)

    fwd = jax.jit(epiconv_forward, static_argnums=(3,))
    out = fwd(x, weight1, weight2, angRes)
    out = jax.block_until_ready(out)

    ref = epiconv_reference(x, weight1, weight2, angRes)
    assert out.shape == (b, angRes, angRes, channel_out, h, w), out.shape
    assert jnp.allclose(out, ref, atol=2e-2, rtol=2e-2), float(
        jnp.max(jnp.abs(out - ref)))

    print("KERNEL_OK")
</pallas_src>

<mosaic_0001>
module attributes {stable_mosaic.version = 11 : i64} {
  func.func @_epiconv_kernel(%arg0: i32, %arg1: memref<24x18x12xbf16, #tpu.memory_space<vmem>>, %arg2: memref<3x8x12xf32, #tpu.memory_space<vmem>>, %arg3: memref<24x8xf32, #tpu.memory_space<vmem>>, %arg4: memref<24x384xf32, #tpu.memory_space<vmem>>) attributes {dimension_semantics = [#tpu.dimension_semantics<parallel>], iteration_bounds = array<i64: 2>, scalar_prefetch = 0 : i64, scratch_operands = 0 : i64, tpu.core_type = #tpu.core_type<tc>, window_params = [{transform_indices = @transform_0, window_bounds = array<i64: 24, 18, 12>}, {pipeline_mode = #tpu.pipeline_mode<synchronous>, transform_indices = @transform_1, window_bounds = array<i64: 3, 8, 12>}, {pipeline_mode = #tpu.pipeline_mode<synchronous>, transform_indices = @transform_2, window_bounds = array<i64: 24, 8>}, {transform_indices = @transform_3, window_bounds = array<i64: 24, 384>}]} {
    %c0 = arith.constant 0 : index
    %c0_0 = arith.constant 0 : index
    %c0_1 = arith.constant 0 : index
    %0 = vector.load %arg1[%c0, %c0_0, %c0_1] : memref<24x18x12xbf16, #tpu.memory_space<vmem>>, vector<24x18x12xbf16>
    %1 = arith.extf %0 : vector<24x18x12xbf16> to vector<24x18x12xf32>
    %2 = vector.extract_strided_slice %1 {offsets = [0, 0, 0], sizes = [24, 16, 12], strides = [1, 1, 1]} : vector<24x18x12xf32> to vector<24x16x12xf32>
    %3 = vector.shape_cast %2 : vector<24x16x12xf32> to vector<384x12xf32>
    %c0_2 = arith.constant 0 : index
    %c0_3 = arith.constant 0 : index
    %c0_4 = arith.constant 0 : index
    %4 = vector.load %arg2[%c0_2, %c0_3, %c0_4] : memref<3x8x12xf32, #tpu.memory_space<vmem>>, vector<1x8x12xf32>
    %5 = vector.shape_cast %4 : vector<1x8x12xf32> to vector<8x12xf32>
    %cst = arith.constant dense<0.000000e+00> : vector<8x384xf32>
    %6 = tpu.matmul %5, %3, %cst {dimension_numbers = #tpu.dot_dimension_numbers<[1], [1], [0], [0], [0, 0, 1, 0], [], []>} : vector<8x12xf32>, vector<384x12xf32>, vector<8x384xf32> -> vector<8x384xf32>
    %7 = vector.extract_strided_slice %1 {offsets = [0, 1, 0], sizes = [24, 16, 12], strides = [1, 1, 1]} : vector<24x18x12xf32> to vector<24x16x12xf32>
    %8 = vector.shape_cast %7 : vector<24x16x12xf32> to vector<384x12xf32>
    %c1 = arith.constant 1 : index
    %c0_5 = arith.constant 0 : index
    %c0_6 = arith.constant 0 : index
    %9 = vector.load %arg2[%c1, %c0_5, %c0_6] : memref<3x8x12xf32, #tpu.memory_space<vmem>>, vector<1x8x12xf32>
    %10 = vector.shape_cast %9 : vector<1x8x12xf32> to vector<8x12xf32>
    %cst_7 = arith.constant dense<0.000000e+00> : vector<8x384xf32>
    %11 = tpu.matmul %10, %8, %cst_7 {dimension_numbers = #tpu.dot_dimension_numbers<[1], [1], [0], [0], [0, 0, 1, 0], [], []>} : vector<8x12xf32>, vector<384x12xf32>, vector<8x384xf32> -> vector<8x384xf32>
    %12 = arith.addf %6, %11 : vector<8x384xf32>
    %13 = vector.extract_strided_slice %1 {offsets = [0, 2, 0], sizes = [24, 16, 12], strides = [1, 1, 1]} : vector<24x18x12xf32> to vector<24x16x12xf32>
    %14 = vector.shape_cast %13 : vector<24x16x12xf32> to vector<384x12xf32>
    %c2 = arith.constant 2 : index
    %c0_8 = arith.constant 0 : index
    %c0_9 = arith.constant 0 : index
    %15 = vector.load %arg2[%c2, %c0_8, %c0_9] : memref<3x8x12xf32, #tpu.memory_space<vmem>>, vector<1x8x12xf32>
    %16 = vector.shape_cast %15 : vector<1x8x12xf32> to vector<8x12xf32>
    %cst_10 = arith.constant dense<0.000000e+00> : vector<8x384xf32>
    %17 = tpu.matmul %16, %14, %cst_10 {dimension_numbers = #tpu.dot_dimension_numbers<[1], [1], [0], [0], [0, 0, 1, 0], [], []>} : vector<8x12xf32>, vector<384x12xf32>, vector<8x384xf32> -> vector<8x384xf32>
    %18 = arith.addf %12, %17 : vector<8x384xf32>
    %cst_11 = arith.constant 0.000000e+00 : f32
    %19 = vector.broadcast %cst_11 : f32 to vector<8x384xf32>
    %20 = arith.cmpf oge, %18, %19 : vector<8x384xf32>
    %cst_12 = arith.constant 1.000000e-01 : f32
    %21 = vector.broadcast %cst_12 : f32 to vector<8x384xf32>
    %22 = arith.mulf %21, %18 : vector<8x384xf32>
    %23 = arith.select %20, %18, %22 : vector<8x384xi1>, vector<8x384xf32>
    %c0_13 = arith.constant 0 : index
    %c0_14 = arith.constant 0 : index
    %24 = vector.load %arg3[%c0_13, %c0_14] : memref<24x8xf32, #tpu.memory_space<vmem>>, vector<24x8xf32>
    %cst_15 = arith.constant dense<0.000000e+00> : vector<24x384xf32>
    %25 = tpu.matmul %24, %23, %cst_15 {dimension_numbers = #tpu.dot_dimension_numbers<[1], [0], [0], [1], [0, 0, 1, 1], [], []>} : vector<24x8xf32>, vector<8x384xf32>, vector<24x384xf32> -> vector<24x384xf32>
    %cst_16 = arith.constant 0.000000e+00 : f32
    %26 = vector.broadcast %cst_16 : f32 to vector<24x384xf32>
    %27 = arith.cmpf oge, %25, %26 : vector<24x384xf32>
    %cst_17 = arith.constant 1.000000e-01 : f32
    %28 = vector.broadcast %cst_17 : f32 to vector<24x384xf32>
    %29 = arith.mulf %28, %25 : vector<24x384xf32>
    %30 = arith.select %27, %25, %29 : vector<24x384xi1>, vector<24x384xf32>
    %c0_18 = arith.constant 0 : index
    %c0_19 = arith.constant 0 : index
    %31 = vector.load %arg4[%c0_18, %c0_19] : memref<24x384xf32, #tpu.memory_space<vmem>>, vector<24x384xf32>
    tpu.vector_store %arg4[%c0_18, %c0_19], %30 {strides = array<i32>} : memref<24x384xf32, #tpu.memory_space<vmem>>, vector<24x384xf32>,
    return
  }
  func.func @transform_0(%arg0: i32) -> (i32, i32, i32) {
    %c0_i32 = arith.constant 0 : i32
    %c0_i32_0 = arith.constant 0 : i32
    %c0_i32_1 = arith.constant 0 : i32
    return %arg0, %c0_i32, %c0_i32_0 : i32, i32, i32
  }
  func.func @transform_1(%arg0: i32) -> (i32, i32, i32) {
    %c0_i32 = arith.constant 0 : i32
    %c0_i32_0 = arith.constant 0 : i32
    %c0_i32_1 = arith.constant 0 : i32
    %c0_i32_2 = arith.constant 0 : i32
    return %c0_i32, %c0_i32_0, %c0_i32_1 : i32, i32, i32
  }
  func.func @transform_2(%arg0: i32) -> (i32, i32) {
    %c0_i32 = arith.constant 0 : i32
    %c0_i32_0 = arith.constant 0 : i32
    %c0_i32_1 = arith.constant 0 : i32
    return %c0_i32, %c0_i32_0 : i32, i32
  }
  func.func @transform_3(%arg0: i32) -> (i32, i32) {
    %c0_i32 = arith.constant 0 : i32
    %c0_i32_0 = arith.constant 0 : i32
    return %c0_i32, %arg0 : i32, i32
  }
}

</mosaic_0001>

<llo_original>
// kernel: epiconv_forward.1
$region0: #{epiconv_forward.1}
  #allocation0 [shape = 'u32[]', space=smem, size = 0x4, offset = 0x4, fixed_abs, tag = 'smem constant byte address 0x4 - core index']
  #allocation1 [shape = 'u32[144,128]{1,0:T(1,128)}', space=vmem, size = 0x12000, scoped, tag = 'internal scratch']
  %s0 = inlined_call_operand.vmem [shape: bf16[48,18,12], index: 0, kind: input, shape index: {}]
  %s1 = inlined_call_operand.vmem [shape: f32[3,8,12], index: 1, kind: input, shape index: {}]
  %s2 = inlined_call_operand.vmem [shape: f32[24,8], index: 2, kind: input, shape index: {}]
  %s3 = inlined_call_operand.vmem [shape: f32[24,768], index: 3, kind: output, shape index: {}]
  %s4 = sld [smem:[#allocation0]]
  $region64: #{epiconv_forward.1} parent=0
    _
  %s6 = ssub.s32 1, %s4
  %s7 = scalar_select 0, %s6, %s4
  $region1: #{epiconv_forward.1} parent=0
    #allocation2 [shape = 'u8[73728]{0}', space=vmem, size = 0x12000, scoped, tag = 'output window, operand 0']
    loop: start=0, step=1, limit=4
    $region2: #{epiconv_forward.1} parent=1 // loop_pre_header
      _
    $region3: #{epiconv_forward.1} parent=1 // loop_header
      %s9 = sphi 0, %s13
      %p10 = scmp.ge.s32.totalorder %s9, 4
      %s19 = sphi 0, %s21
      %s22 = sphi 0, %s19
      %s23 = sphi 0, %s22
      %s39 = sphi 0, %s23
      %s43 = sphi 0, %s43
      %s45 = sphi 0, %s43
      %s46 = sphi 0, %s45
      %s60 = sphi 0, %s46
      %s64 = sphi 0, %s64
      %s66 = sphi 0, %s64
      %s67 = sphi 0, %s66
      %s81 = sphi 0, %s67
      %s87 = sphi 0, %s89
      %s90 = sphi 0, %s87
      %s91 = sphi 0, %s90
      %s107 = sphi 0, %s91
    $region4: #{epiconv_forward.1} parent=1 // loop_header_branch
      %12 = sbr.rel (%p10) target = $region8
    $region5: #{epiconv_forward.1} parent=1 // loop_body
      %s14 = ssub.s32 %s9, 1
      %s15 = ssub.s32 %s9, 2
      %s16 = sadd.s32 %s9, 1
      %s17 = ssub.s32 %s9, %s16
      %p18 = scmp.eq.s32.totalorder %s17, 0
      %s20 = sadd.s32 %s19, 1
      %s21 = scalar_select %p18, %s19, %s20
      %p24 = pneg %p18
      %p25 = scmp.eq.s32.totalorder %s9, 1
      %p26 = por %p24, %p25
      %p27 = scmp.ne.s32.totalorder %s19, %s22
      %p28 = scmp.eq.s32.totalorder %s9, 0
      %p29 = por %p27, %p28
      %p30 = scmp.ne.s32.totalorder %s19, %s22
      %p31 = scmp.eq.s32.totalorder %s14, 1
      %p32 = por %p30, %p31
      %p33 = scmp.ne.s32.totalorder %s22, %s23
      %p34 = scmp.eq.s32.totalorder %s14, 0
      %p35 = por %p33, %p34
      %p36 = scmp.ne.s32.totalorder %s22, %s23
      %p37 = scmp.eq.s32.totalorder %s15, 1
      %p38 = por %p36, %p37
      %p40 = scmp.ne.s32.totalorder %s23, %s39
      %p41 = scmp.eq.s32.totalorder %s15, 0
      %p42 = por %p40, %p41
      %s44 = sadd.s32 %s43, 1
      %p47 = scmp.eq.s32.totalorder %s9, 1
      %p48 = scmp.ne.s32.totalorder %s43, %s45
      %p49 = scmp.eq.s32.totalorder %s9, 0
      %p50 = por %p48, %p49
      %p51 = scmp.ne.s32.totalorder %s43, %s45
      %p52 = scmp.eq.s32.totalorder %s14, 1
      %p53 = por %p51, %p52
      %p54 = scmp.ne.s32.totalorder %s45, %s46
      %p55 = scmp.eq.s32.totalorder %s14, 0
      %p56 = por %p54, %p55
      %p57 = scmp.ne.s32.totalorder %s45, %s46
      %p58 = scmp.eq.s32.totalorder %s15, 1
      %p59 = por %p57, %p58
      %p61 = scmp.ne.s32.totalorder %s46, %s60
      %p62 = scmp.eq.s32.totalorder %s15, 0
      %p63 = por %p61, %p62
      %s65 = sadd.s32 %s64, 1
      %p68 = scmp.eq.s32.totalorder %s9, 1
      %p69 = scmp.ne.s32.totalorder %s64, %s66
      %p70 = scmp.eq.s32.totalorder %s9, 0
      %p71 = por %p69, %p70
      %p72 = scmp.ne.s32.totalorder %s64, %s66
      %p73 = scmp.eq.s32.totalorder %s14, 1
      %p74 = por %p72, %p73
      %p75 = scmp.ne.s32.totalorder %s66, %s67
      %p76 = scmp.eq.s32.totalorder %s14, 0
      %p77 = por %p75, %p76
      %p78 = scmp.ne.s32.totalorder %s66, %s67
      %p79 = scmp.eq.s32.totalorder %s15, 1
      %p80 = por %p78, %p79
      %p82 = scmp.ne.s32.totalorder %s67, %s81
      %p83 = scmp.eq.s32.totalorder %s15, 0
      %p84 = por %p82, %p83
      %s85 = ssub.s32 %s9, %s16
      %p86 = scmp.eq.s32.totalorder %s85, 0
      %s88 = sadd.s32 %s87, 1
      %s89 = scalar_select %p86, %s87, %s88
      %p92 = pneg %p86
      %p93 = scmp.eq.s32.totalorder %s9, 1
      %p94 = por %p92, %p93
      %p95 = scmp.ne.s32.totalorder %s87, %s90
      %p96 = scmp.eq.s32.totalorder %s9, 0
      %p97 = por %p95, %p96
      %p98 = scmp.ne.s32.totalorder %s87, %s90
      %p99 = scmp.eq.s32.totalorder %s14, 1
      %p100 = por %p98, %p99
      %p101 = scmp.ne.s32.totalorder %s90, %s91
      %p102 = scmp.eq.s32.totalorder %s14, 0
      %p103 = por %p101, %p102
      %p104 = scmp.ne.s32.totalorder %s90, %s91
      %p105 = scmp.eq.s32.totalorder %s15, 1
      %p106 = por %p104, %p105
      %p108 = scmp.ne.s32.totalorder %s91, %s107
      %p109 = scmp.eq.s32.totalorder %s15, 0
      %p110 = por %p108, %p109
      %p111 = scmp.le.s32.totalorder 1, %s9
      %p112 = scmp.lt.s32.totalorder %s9, 3
      %p113 = pnand %p111, %p112
      %p114 = pneg %p113
      // Predicated region
      $region9: #{epiconv_forward.1} parent=5 // pred_check
        _
      $region10: #{epiconv_forward.1} parent=5 // pred_check_branch
        %116 = sbr.rel (%p113) target = $region12
      $region11: #{epiconv_forward.1} parent=5 // pred_region
        %s117 = ssub.s32 %s9, 1
        // Predicated region
        $region13: #{epiconv_forward.1} parent=11 // pred_check
          %p118 = pneg %p56
        $region14: #{epiconv_forward.1} parent=11 // pred_check_branch
          %120 = sbr.rel (%p118) target = $region16
        $region15: #{epiconv_forward.1} parent=11 // pred_region
          _
        $region16: #{epiconv_forward.1} parent=11 // pred_fallthru
          _
        // Predicated region
        $region17: #{epiconv_forward.1} parent=11 // pred_check
          %p121 = pneg %p77
        $region18: #{epiconv_forward.1} parent=11 // pred_check_branch
          %123 = sbr.rel (%p121) target = $region20
        $region19: #{epiconv_forward.1} parent=11 // pred_region
          _
        $region20: #{epiconv_forward.1} parent=11 // pred_fallthru
          _
      $region12: #{epiconv_forward.1} parent=5 // pred_fallthru
        _
      %p124 = scmp.lt.s32.totalorder %s9, 2
      // Predicated region
      $region21: #{epiconv_forward.1} parent=5 // pred_check
        %p125 = pneg %p124
      $region22: #{epiconv_forward.1} parent=5 // pred_check_branch
        %127 = sbr.rel (%p125) target = $region24
      $region23: #{epiconv_forward.1} parent=5 // pred_region
        // Predicated region
        $region25: #{epiconv_forward.1} parent=23 // pred_check
          %p128 = pneg %p29
        $region26: #{epiconv_forward.1} parent=23 // pred_check_branch
          %130 = sbr.rel (%p128) target = $region28
        $region27: #{epiconv_forward.1} parent=23 // pred_region
          %s131 = smul.u32 24, %s9
          %p132 = scmp.lt.s32.totalorder %s131, 47
          %s133 = scalar_select %p132, %s131, 47
          %s134 = smul.addr %s133, 3
          %s135 = smul.addr %s134, 4
          %s136 = scalar_lea.vmem %s0, %s135
          %s137 = smul.u32 24, %s9
        $region28: #{epiconv_forward.1} parent=23 // pred_fallthru
          _
      $region24: #{epiconv_forward.1} parent=5 // pred_fallthru
        _
      %p138 = scmp.le.s32.totalorder 1, %s9
      %p139 = scmp.lt.s32.totalorder %s9, 3
      %p140 = pnand %p138, %p139
      %p141 = pneg %p140
      // Predicated region
      $region29: #{epiconv_forward.1} parent=5 // pred_check
        _
      $region30: #{epiconv_forward.1} parent=5 // pred_check_branch
        %143 = sbr.rel (%p140) target = $region32
      $region31: #{epiconv_forward.1} parent=5 // pred_region
        %s144 = ssub.s32 %s9, 1
        %s145 = smul.u32 24, %s14
        %p146 = scmp.lt.s32.totalorder %s145, 47
        %s147 = scalar_select %p146, %s145, 47
        %s148 = smul.addr %s147, 3
        %s149 = smul.addr %s148, 4
        %s150 = scalar_lea.vmem %s0, %s149
        %p151 = pneg %p35
        %p152 = pneg %p32
        %p153 = pneg %p56
        %p154 = pneg %p53
        %p155 = pneg %p77
        %p156 = pneg %p74
        %p157 = pneg %p103
        %p158 = pneg %p100
        %s159 = sand.u32 %s90, 1
        %s160 = sand.u32 %s90, 1
        %s161 = smul.addr %s160, 72
        %s162 = scalar_lea.vmem [#allocation2], %s161
        %s163 = smul.u32 24, %s14
        %p164 = scmp.lt.s32.totalorder %s163, 47
        %s165 = scalar_select %p164, %s163, 47
        %s166 = smul.addr %s165, 3
        %s167 = smul.addr %s166, 4
        %s168 = scalar_lea.vmem %s0, %s167
        %s169 = smul.u32 24, %s14
        %s170 = smul.u32 3, %s14
        %v171 = vld [vmem:[%s168] sm:$0xf]
        %v172 = vld [vmem:[%s168 + $0x4] sm:$0xf]
        %v173 = vld [vmem:[%s168 + $0x8] sm:$0x1]
        %v174 = vld [vmem:[%s168 + $0xc] sm:$0xf]
        %v175 = vld [vmem:[%s168 + $0x10] sm:$0xf]
        %v176 = vld [vmem:[%s168 + $0x14] sm:$0x1]
        %v177 = vld [vmem:[%s168 + $0x18] sm:$0xf]
        %v178 = vld [vmem:[%s168 + $0x1c] sm:$0xf]
        %v179 = vld [vmem:[%s168 + $0x20] sm:$0x1]
        %v180 = vld [vmem:[%s168 + $0x24] sm:$0xf]
        %v181 = vld [vmem:[%s168 + $0x28] sm:$0xf]
        %v182 = vld [vmem:[%s168 + $0x2c] sm:$0x1]
        %v183 = vld [vmem:[%s168 + $0x30] sm:$0xf]
        %v184 = vld [vmem:[%s168 + $0x34] sm:$0xf]
        %v185 = vld [vmem:[%s168 + $0x38] sm:$0x1]
        %v186 = vld [vmem:[%s168 + $0x3c] sm:$0xf]
        %v187 = vld [vmem:[%s168 + $0x40] sm:$0xf]
        %v188 = vld [vmem:[%s168 + $0x44] sm:$0x1]
        %v189 = vld [vmem:[%s168 + $0x48] sm:$0xf]
        %v190 = vld [vmem:[%s168 + $0x4c] sm:$0xf]
        %v191 = vld [vmem:[%s168 + $0x50] sm:$0x1]
        %v192 = vld [vmem:[%s168 + $0x54] sm:$0xf]
        %v193 = vld [vmem:[%s168 + $0x58] sm:$0xf]
        %v194 = vld [vmem:[%s168 + $0x5c] sm:$0x1]
        %v195 = vld [vmem:[%s168 + $0x60] sm:$0xf]
        %v196 = vld [vmem:[%s168 + $0x64] sm:$0xf]
        %v197 = vld [vmem:[%s168 + $0x68] sm:$0x1]
        %v198 = vld [vmem:[%s168 + $0x6c] sm:$0xf]
        %v199 = vld [vmem:[%s168 + $0x70] sm:$0xf]
        %v200 = vld [vmem:[%s168 + $0x74] sm:$0x1]
        %v201 = vld [vmem:[%s168 + $0x78] sm:$0xf]
        %v202 = vld [vmem:[%s168 + $0x7c] sm:$0xf]
        %v203 = vld [vmem:[%s168 + $0x80] sm:$0x1]
        %v204 = vld [vmem:[%s168 + $0x84] sm:$0xf]
        %v205 = vld [vmem:[%s168 + $0x88] sm:$0xf]
        %v206 = vld [vmem:[%s168 + $0x8c] sm:$0x1]
        %v207 = vld [vmem:[%s168 + $0x90] sm:$0xf]
        %v208 = vld [vmem:[%s168 + $0x94] sm:$0xf]
        %v209 = vld [vmem:[%s168 + $0x98] sm:$0x1]
        %v210 = vld [vmem:[%s168 + $0x9c] sm:$0xf]
        %v211 = vld [vmem:[%s168 + $0xa0] sm:$0xf]
        %v212 = vld [vmem:[%s168 + $0xa4] sm:$0x1]
        %v213 = vld [vmem:[%s168 + $0xa8] sm:$0xf]
        %v214 = vld [vmem:[%s168 + $0xac] sm:$0xf]
        %v215 = vld [vmem:[%s168 + $0xb0] sm:$0x1]
        %v216 = vld [vmem:[%s168 + $0xb4] sm:$0xf]
        %v217 = vld [vmem:[%s168 + $0xb8] sm:$0xf]
        %v218 = vld [vmem:[%s168 + $0xbc] sm:$0x1]
        %v219 = vld [vmem:[%s168 + $0xc0] sm:$0xf]
        %v220 = vld [vmem:[%s168 + $0xc4] sm:$0xf]
        %v221 = vld [vmem:[%s168 + $0xc8] sm:$0x1]
        %v222 = vld [vmem:[%s168 + $0xcc] sm:$0xf]
        %v223 = vld [vmem:[%s168 + $0xd0] sm:$0xf]
        %v224 = vld [vmem:[%s168 + $0xd4] sm:$0x1]
        %v225 = vld [vmem:[%s168 + $0xd8] sm:$0xf]
        %v226 = vld [vmem:[%s168 + $0xdc] sm:$0xf]
        %v227 = vld [vmem:[%s168 + $0xe0] sm:$0x1]
        %v228 = vld [vmem:[%s168 + $0xe4] sm:$0xf]
        %v229 = vld [vmem:[%s168 + $0xe8] sm:$0xf]
        %v230 = vld [vmem:[%s168 + $0xec] sm:$0x1]
        %v231 = vld [vmem:[%s168 + $0xf0] sm:$0xf]
        %v232 = vld [vmem:[%s168 + $0xf4] sm:$0xf]
        %v233 = vld [vmem:[%s168 + $0xf8] sm:$0x1]
        %v234 = vld [vmem:[%s168 + $0xfc] sm:$0xf]
        %v235 = vld [vmem:[%s168 + $0x100] sm:$0xf]
        %v236 = vld [vmem:[%s168 + $0x104] sm:$0x1]
        %v237 = vld [vmem:[%s168 + $0x108] sm:$0xf]
        %v238 = vld [vmem:[%s168 + $0x10c] sm:$0xf]
        %v239 = vld [vmem:[%s168 + $0x110] sm:$0x1]
        %v240 = vld [vmem:[%s168 + $0x114] sm:$0xf]
        %v241 = vld [vmem:[%s168 + $0x118] sm:$0xf]
        %v242 = vld [vmem:[%s168 + $0x11c] sm:$0x1]
        %v243 = vunpack.c.l.bf16 %v171
        %v244 = vunpack.c.l.bf16 %v172
        %v245 = vunpack.c.l.bf16 %v173
        %v246 = vunpack.c.l.bf16 %v174
        %v247 = vunpack.c.l.bf16 %v175
        %v248 = vunpack.c.l.bf16 %v176
        %v249 = vunpack.c.l.bf16 %v177
        %v250 = vunpack.c.l.bf16 %v178
        %v251 = vunpack.c.l.bf16 %v179
        %v252 = vunpack.c.l.bf16 %v180
        %v253 = vunpack.c.l.bf16 %v181
        %v254 = vunpack.c.l.bf16 %v182
        %v255 = vunpack.c.l.bf16 %v183
        %v256 = vunpack.c.l.bf16 %v184
        %v257 = vunpack.c.l.bf16 %v185
        %v258 = vunpack.c.l.bf16 %v186
        %v259 = vunpack.c.l.bf16 %v187
        %v260 = vunpack.c.l.bf16 %v188
        %v261 = vunpack.c.l.bf16 %v189
        %v262 = vunpack.c.l.bf16 %v190
        %v263 = vunpack.c.l.bf16 %v191
        %v264 = vunpack.c.l.bf16 %v192
        %v265 = vunpack.c.l.bf16 %v193
        %v266 = vunpack.c.l.bf16 %v194
        %v267 = vunpack.c.l.bf16 %v195
        %v268 = vunpack.c.l.bf16 %v196
        %v269 = vunpack.c.l.bf16 %v197
        %v270 = vunpack.c.l.bf16 %v198
        %v271 = vunpack.c.l.bf16 %v199
        %v272 = vunpack.c.l.bf16 %v200
        %v273 = vunpack.c.l.bf16 %v201
        %v274 = vunpack.c.l.bf16 %v202
        %v275 = vunpack.c.l.bf16 %v203
        %v276 = vunpack.c.l.bf16 %v204
        %v277 = vunpack.c.l.bf16 %v205
        %v278 = vunpack.c.l.bf16 %v206
        %v279 = vunpack.c.l.bf16 %v207
        %v280 = vunpack.c.l.bf16 %v208
        %v281 = vunpack.c.l.bf16 %v209
        %v282 = vunpack.c.l.bf16 %v210
        %v283 = vunpack.c.l.bf16 %v211
        %v284 = vunpack.c.l.bf16 %v212
        %v285 = vunpack.c.l.bf16 %v213
        %v286 = vunpack.c.l.bf16 %v214
        %v287 = vunpack.c.l.bf16 %v215
        %v288 = vunpack.c.l.bf16 %v216
        %v289 = vunpack.c.l.bf16 %v217
        %v290 = vunpack.c.l.bf16 %v218
        %v291 = vunpack.c.l.bf16 %v219
        %v292 = vunpack.c.l.bf16 %v220
        %v293 = vunpack.c.l.bf16 %v221
        %v294 = vunpack.c.l.bf16 %v222
        %v295 = vunpack.c.l.bf16 %v223
        %v296 = vunpack.c.l.bf16 %v224
        %v297 = vunpack.c.l.bf16 %v225
        %v298 = vunpack.c.l.bf16 %v226
        %v299 = vunpack.c.l.bf16 %v227
        %v300 = vunpack.c.l.bf16 %v228
        %v301 = vunpack.c.l.bf16 %v229
        %v302 = vunpack.c.l.bf16 %v230
        %v303 = vunpack.c.l.bf16 %v231
        %v304 = vunpack.c.l.bf16 %v232
        %v305 = vunpack.c.l.bf16 %v233
        %v306 = vunpack.c.l.bf16 %v234
        %v307 = vunpack.c.l.bf16 %v235
        %v308 = vunpack.c.l.bf16 %v236
        %v309 = vunpack.c.l.bf16 %v237
        %v310 = vunpack.c.l.bf16 %v238
        %v311 = vunpack.c.l.bf16 %v239
        %v312 = vunpack.c.l.bf16 %v240
        %v313 = vunpack.c.l.bf16 %v241
        %v314 = vunpack.c.l.bf16 %v242
        %v315 = vld [vmem:[%s1] sm:$0xff]
        %vm388 = vcmask 1046528
        %v389 = vrot.slane %v243, 1
        %v390 = vrot.slane %v244, 1
        %v391 = vsel %vm388, %v389, %v390
        %v392 = vrot.slane %v245, 1
        %v393 = vsel %vm388, %v390, %v392
        %v394 = vrot.slane %v246, 1
        %v395 = vrot.slane %v247, 1
        %v396 = vsel %vm388, %v394, %v395
        %v397 = vrot.slane %v248, 1
        %v398 = vsel %vm388, %v395, %v397
        %v399 = vrot.slane %v249, 1
        %v400 = vrot.slane %v250, 1
        %v401 = vsel %vm388, %v399, %v400
        %v402 = vrot.slane %v251, 1
        %v403 = vsel %vm388, %v400, %v402
        %v404 = vrot.slane %v252, 1
        %v405 = vrot.slane %v253, 1
        %v406 = vsel %vm388, %v404, %v405
        %v407 = vrot.slane %v254, 1
        %v408 = vsel %vm388, %v405, %v407
        %v409 = vrot.slane %v255, 1
        %v410 = vrot.slane %v256, 1
        %v411 = vsel %vm388, %v409, %v410
        %v412 = vrot.slane %v257, 1
        %v413 = vsel %vm388, %v410, %v412
        %v414 = vrot.slane %v258, 1
        %v415 = vrot.slane %v259, 1
        %v416 = vsel %vm388, %v414, %v415
        %v417 = vrot.slane %v260, 1
        %v418 = vsel %vm388, %v415, %v417
        %v419 = vrot.slane %v261, 1
        %v420 = vrot.slane %v262, 1
        %v421 = vsel %vm388, %v419, %v420
        %v422 = vrot.slane %v263, 1
        %v423 = vsel %vm388, %v420, %v422
        %v424 = vrot.slane %v264, 1
        %v425 = vrot.slane %v265, 1
        %v426 = vsel %vm388, %v424, %v425
        %v427 = vrot.slane %v266, 1
        %v428 = vsel %vm388, %v425, %v427
        %v429 = vrot.slane %v267, 1
        %v430 = vrot.slane %v268, 1
        %v431 = vsel %vm388, %v429, %v430
        %v432 = vrot.slane %v269, 1
        %v433 = vsel %vm388, %v430, %v432
        %v434 = vrot.slane %v270, 1
        %v435 = vrot.slane %v271, 1
        %v436 = vsel %vm388, %v434, %v435
        %v437 = vrot.slane %v272, 1
        %v438 = vsel %vm388, %v435, %v437
        %v439 = vrot.slane %v273, 1
        %v440 = vrot.slane %v274, 1
        %v441 = vsel %vm388, %v439, %v440
        %v442 = vrot.slane %v275, 1
        %v443 = vsel %vm388, %v440, %v442
        %v444 = vrot.slane %v276, 1
        %v445 = vrot.slane %v277, 1
        %v446 = vsel %vm388, %v444, %v445
        %v447 = vrot.slane %v278, 1
        %v448 = vsel %vm388, %v445, %v447
        %v449 = vrot.slane %v279, 1
        %v450 = vrot.slane %v280, 1
        %v451 = vsel %vm388, %v449, %v450
        %v452 = vrot.slane %v281, 1
        %v453 = vsel %vm388, %v450, %v452
        %v454 = vrot.slane %v282, 1
        %v455 = vrot.slane %v283, 1
        %v456 = vsel %vm388, %v454, %v455
        %v457 = vrot.slane %v284, 1
        %v458 = vsel %vm388, %v455, %v457
        %v459 = vrot.slane %v285, 1
        %v460 = vrot.slane %v286, 1
        %v461 = vsel %vm388, %v459, %v460
        %v462 = vrot.slane %v287, 1
        %v463 = vsel %vm388, %v460, %v462
        %v464 = vrot.slane %v288, 1
        %v465 = vrot.slane %v289, 1
        %v466 = vsel %vm388, %v464, %v465
        %v467 = vrot.slane %v290, 1
        %v468 = vsel %vm388, %v465, %v467
        %v469 = vrot.slane %v291, 1
        %v470 = vrot.slane %v292, 1
        %v471 = vsel %vm388, %v469, %v470
        %v472 = vrot.slane %v293, 1
        %v473 = vsel %vm388, %v470, %v472
        %v474 = vrot.slane %v294, 1
        %v475 = vrot.slane %v295, 1
        %v476 = vsel %vm388, %v474, %v475
        %v477 = vrot.slane %v296, 1
        %v478 = vsel %vm388, %v475, %v477
        %v479 = vrot.slane %v297, 1
        %v480 = vrot.slane %v298, 1
        %v481 = vsel %vm388, %v479, %v480
        %v482 = vrot.slane %v299, 1
        %v483 = vsel %vm388, %v480, %v482
        %v484 = vrot.slane %v300, 1
        %v485 = vrot.slane %v301, 1
        %v486 = vsel %vm388, %v484, %v485
        %v487 = vrot.slane %v302, 1
        %v488 = vsel %vm388, %v485, %v487
        %v489 = vrot.slane %v303, 1
        %v490 = vrot.slane %v304, 1
        %v491 = vsel %vm388, %v489, %v490
        %v492 = vrot.slane %v305, 1
        %v493 = vsel %vm388, %v490, %v492
        %v494 = vrot.slane %v306, 1
        %v495 = vrot.slane %v307, 1
        %v496 = vsel %vm388, %v494, %v495
        %v497 = vrot.slane %v308, 1
        %v498 = vsel %vm388, %v495, %v497
        %v499 = vrot.slane %v309, 1
        %v500 = vrot.slane %v310, 1
        %v501 = vsel %vm388, %v499, %v500
        %v502 = vrot.slane %v311, 1
        %v503 = vsel %vm388, %v500, %v502
        %v504 = vrot.slane %v312, 1
        %v505 = vrot.slane %v313, 1
        %v506 = vsel %vm388, %v504, %v505
        %v507 = vrot.slane %v314, 1
        %v508 = vsel %vm388, %v505, %v507
        %s509 = scalar_lea.vmem %s1, 8
        %v510 = vld [vmem:[%s509] sm:$0xff]
        %vm511 = vcmask 97280
        %v513 = vsel %vm511, %v510, 0
        %v515 = vsel %vm511, %v391, 0
        %v517 = vsel %vm511, %v393, 0
        %v519 = vsel %vm511, %v396, 0
        %v521 = vsel %vm511, %v398, 0
        %v523 = vsel %vm511, %v401, 0
        %v525 = vsel %vm511, %v403, 0
        %v527 = vsel %vm511, %v406, 0
        %v529 = vsel %vm511, %v408, 0
        %v531 = vsel %vm511, %v411, 0
        %v533 = vsel %vm511, %v413, 0
        %v535 = vsel %vm511, %v416, 0
        %v537 = vsel %vm511, %v418, 0
        %v539 = vsel %vm511, %v421, 0
        %v541 = vsel %vm511, %v423, 0
        %v543 = vsel %vm511, %v426, 0
        %v545 = vsel %vm511, %v428, 0
        %v547 = vsel %vm511, %v431, 0
        %v549 = vsel %vm511, %v433, 0
        %v551 = vsel %vm511, %v436, 0
        %v553 = vsel %vm511, %v438, 0
        %v555 = vsel %vm511, %v441, 0
        %v557 = vsel %vm511, %v443, 0
        %v559 = vsel %vm511, %v446, 0
        %v561 = vsel %vm511, %v448, 0
        %v563 = vsel %vm511, %v451, 0
        %v565 = vsel %vm511, %v453, 0
        %v567 = vsel %vm511, %v456, 0
        %v569 = vsel %vm511, %v458, 0
        %v571 = vsel %vm511, %v461, 0
        %v573 = vsel %vm511, %v463, 0
        %v575 = vsel %vm511, %v466, 0
        %v577 = vsel %vm511, %v468, 0
        %v579 = vsel %vm511, %v471, 0
        %v581 = vsel %vm511, %v473, 0
        %v583 = vsel %vm511, %v476, 0
        %v585 = vsel %vm511, %v478, 0
        %v587 = vsel %vm511, %v481, 0
        %v589 = vsel %vm511, %v483, 0
        %v591 = vsel %vm511, %v486, 0
        %v593 = vsel %vm511, %v488, 0
        %v595 = vsel %vm511, %v491, 0
        %v597 = vsel %vm511, %v493, 0
        %v599 = vsel %vm511, %v496, 0
        %v601 = vsel %vm511, %v498, 0
        %v603 = vsel %vm511, %v501, 0
        %v605 = vsel %vm511, %v503, 0
        %v607 = vsel %vm511, %v506, 0
        %v609 = vsel %vm511, %v508, 0
        %611 = vmatprep.subr.mxu0 0.0
        %612 = vmatpush1.xpose.msra.mxu0 %v515
        %613 = vmatprep.subr.mxu0 0.0
        %614 = vmatpush1.xpose.msra.mxu0 %v517
        %615 = vmatprep.subr.mxu0 0.0
        %616 = vmatpush1.xpose.msra.mxu0 %v519
        %617 = vmatprep.subr.mxu0 0.0
        %618 = vmatpush1.xpose.msra.mxu0 %v521
        %619 = vmatprep.subr.mxu0 0.0
        %620 = vmatpush1.xpose.msra.mxu0 %v523
        %621 = vmatprep.subr.mxu0 0.0
        %622 = vmatpush1.xpose.msra.mxu0 %v525
        %623 = vmatprep.subr.mxu0 0.0
        %624 = vmatpush1.xpose.msra.mxu0 %v527
        %625 = vmatprep.subr.mxu0 0.0
        %626 = vmatpush1.xpose.msra.mxu0 %v529
        %627 = vmatprep.subr.mxu0 0.0
        %628 = vmatpush1.xpose.msra.mxu0 %v531
        %629 = vmatprep.subr.mxu0 0.0
        %630 = vmatpush1.xpose.msra.mxu0 %v533
        %631 = vmatprep.subr.mxu0 0.0
        %632 = vmatpush1.xpose.msra.mxu0 %v535
        %633 = vmatprep.subr.mxu0 0.0
        %634 = vmatpush1.xpose.msra.mxu0 %v537
        %635 = vmatprep.subr.mxu0 0.0
        %636 = vmatpush1.xpose.msra.mxu0 %v539
        %637 = vmatprep.subr.mxu0 0.0
        %638 = vmatpush1.xpose.msra.mxu0 %v541
        %639 = vmatprep.subr.mxu0 0.0
        %640 = vmatpush1.xpose.msra.mxu0 %v543
        %641 = vmatprep.subr.mxu0 0.0
        %642 = vmatpush1.xpose.msra.mxu0 %v545
        %643 = vmatprep.subr.mxu0 0.0
        %644 = vmatpush1.xpose.msra.mxu0 %v547
        %645 = vmatprep.subr.mxu0 0.0
        %646 = vmatpush1.xpose.msra.mxu0 %v549
        %647 = vmatprep.subr.mxu0 0.0
        %648 = vmatpush1.xpose.msra.mxu0 %v551
        %649 = vmatprep.subr.mxu0 0.0
        %650 = vmatpush1.xpose.msra.mxu0 %v553
        %651 = vmatprep.subr.mxu0 0.0
        %652 = vmatpush1.xpose.msra.mxu0 %v555
        %653 = vmatprep.subr.mxu0 0.0
        %654 = vmatpush1.xpose.msra.mxu0 %v557
        %655 = vmatprep.subr.mxu0 0.0
        %656 = vmatpush1.xpose.msra.mxu0 %v559
        %657 = vmatprep.subr.mxu0 0.0
        %658 = vmatpush1.xpose.msra.mxu0 %v561
        %659 = vmatprep.subr.mxu0 0.0
        %660 = vmatpush1.xpose.msra.mxu0 %v563
        %661 = vmatprep.subr.mxu0 0.0
        %662 = vmatpush1.xpose.msra.mxu0 %v565
        %663 = vmatprep.subr.mxu0 0.0
        %664 = vmatpush1.xpose.msra.mxu0 %v567
        %665 = vmatprep.subr.mxu0 0.0
        %666 = vmatpush1.xpose.msra.mxu0 %v569
        %667 = vmatprep.subr.mxu0 0.0
        %668 = vmatpush1.xpose.msra.mxu0 %v571
        %669 = vmatprep.subr.mxu0 0.0
        %670 = vmatpush1.xpose.msra.mxu0 %v573
        %671 = vmatprep.subr.mxu0 0.0
        %672 = vmatpush1.xpose.msra.mxu0 %v575
        %673 = vmatprep.subr.mxu0 0.0
        %674 = vmatpush1.xpose.msra.mxu0 %v577
        %675 = vmatprep.mubr.f32.mxu0 0.0
        %676 = vmatmul.mubr.f32.gmra.mrb[0].mxu0 %v513
        %v677 = vpop.f32.mrb[0].mxu0
        %v678 = vadd.f32 0.0, %v677
        %v679 = vpop.f32.mrb[0].mxu0
        %v680 = vadd.f32 0.0, %v679
        %681 = vdwg.mxu0
        %682 = vmatprep.subr.mxu0 0.0
        %683 = vmatpush1.xpose.msra.mxu0 %v579
        %684 = vmatprep.subr.mxu0 0.0
        %685 = vmatpush1.xpose.msra.mxu0 %v581
        %686 = vmatprep.subr.mxu0 0.0
        %687 = vmatpush1.xpose.msra.mxu0 %v583
        %688 = vmatprep.subr.mxu0 0.0
        %689 = vmatpush1.xpose.msra.mxu0 %v585
        %690 = vmatprep.subr.mxu0 0.0
        %691 = vmatpush1.xpose.msra.mxu0 %v587
        %692 = vmatprep.subr.mxu0 0.0
        %693 = vmatpush1.xpose.msra.mxu0 %v589
        %694 = vmatprep.subr.mxu0 0.0
        %695 = vmatpush1.xpose.msra.mxu0 %v591
        %696 = vmatprep.subr.mxu0 0.0
        %697 = vmatpush1.xpose.msra.mxu0 %v593
        %698 = vmatprep.subr.mxu0 0.0
        %699 = vmatpush1.xpose.msra.mxu0 %v595
        %700 = vmatprep.subr.mxu0 0.0
        %701 = vmatpush1.xpose.msra.mxu0 %v597
        %702 = vmatprep.subr.mxu0 0.0
        %703 = vmatpush1.xpose.msra.mxu0 %v599
        %704 = vmatprep.subr.mxu0 0.0
        %705 = vmatpush1.xpose.msra.mxu0 %v601
        %706 = vmatprep.subr.mxu0 0.0
        %707 = vmatpush1.xpose.msra.mxu0 %v603
        %708 = vmatprep.subr.mxu0 0.0
        %709 = vmatpush1.xpose.msra.mxu0 %v605
        %710 = vmatprep.subr.mxu0 0.0
        %711 = vmatpush1.xpose.msra.mxu0 %v607
        %712 = vmatprep.subr.mxu0 0.0
        %713 = vmatpush1.xpose.msra.mxu0 %v609
        %714 = vmatprep.subr.mxu0 0.0
        %715 = vmatpush1.xpose.msra.mxu0 0.0
        %716 = vmatprep.subr.mxu0 0.0
        %717 = vmatpush1.xpose.msra.mxu0 0.0
        %718 = vmatprep.subr.mxu0 0.0
        %719 = vmatpush1.xpose.msra.mxu0 0.0
        %720 = vmatprep.subr.mxu0 0.0
        %721 = vmatpush1.xpose.msra.mxu0 0.0
        %722 = vmatprep.subr.mxu0 0.0
        %723 = vmatpush1.xpose.msra.mxu0 0.0
        %724 = vmatprep.subr.mxu0 0.0
        %725 = vmatpush1.xpose.msra.mxu0 0.0
        %726 = vmatprep.subr.mxu0 0.0
        %727 = vmatpush1.xpose.msra.mxu0 0.0
        %728 = vmatprep.subr.mxu0 0.0
        %729 = vmatpush1.xpose.msra.mxu0 0.0
        %730 = vmatprep.subr.mxu0 0.0
        %731 = vmatpush1.xpose.msra.mxu0 0.0
        %732 = vmatprep.subr.mxu0 0.0
        %733 = vmatpush1.xpose.msra.mxu0 0.0
        %734 = vmatprep.subr.mxu0 0.0
        %735 = vmatpush1.xpose.msra.mxu0 0.0
        %736 = vmatprep.subr.mxu0 0.0
        %737 = vmatpush1.xpose.msra.mxu0 0.0
        %738 = vmatprep.subr.mxu0 0.0
        %739 = vmatpush1.xpose.msra.mxu0 0.0
        %740 = vmatprep.subr.mxu0 0.0
        %741 = vmatpush1.xpose.msra.mxu0 0.0
        %742 = vmatprep.subr.mxu0 0.0
        %743 = vmatpush1.xpose.msra.mxu0 0.0
        %744 = vmatprep.subr.mxu0 0.0
        %745 = vmatpush1.xpose.msra.mxu0 0.0
        %746 = vmatprep.mubr.f32.mxu0 0.0
        %747 = vmatmul.mubr.f32.gmra.mrb[0].mxu0 %v513
        %v748 = vpop.f32.mrb[0].mxu0
        %v749 = vadd.f32 0.0, %v748
        %v750 = vpop.f32.mrb[0].mxu0
        %751 = vdwg.mxu0
        %v753 = vsel %vm511, %v315, 0
        %v755 = vsel %vm511, %v243, 0
        %v757 = vsel %vm511, %v244, 0
        %v759 = vsel %vm511, %v246, 0
        %v761 = vsel %vm511, %v247, 0
        %v763 = vsel %vm511, %v249, 0
        %v765 = vsel %vm511, %v250, 0
        %v767 = vsel %vm511, %v252, 0
        %v769 = vsel %vm511, %v253, 0
        %v771 = vsel %vm511, %v255, 0
        %v773 = vsel %vm511, %v256, 0
        %v775 = vsel %vm511, %v258, 0
        %v777 = vsel %vm511, %v259, 0
        %v779 = vsel %vm511, %v261, 0
        %v781 = vsel %vm511, %v262, 0
        %v783 = vsel %vm511, %v264, 0
        %v785 = vsel %vm511, %v265, 0
        %v787 = vsel %vm511, %v267, 0
        %v789 = vsel %vm511, %v268, 0
        %v791 = vsel %vm511, %v270, 0
        %v793 = vsel %vm511, %v271, 0
        %v795 = vsel %vm511, %v273, 0
        %v797 = vsel %vm511, %v274, 0
        %v799 = vsel %vm511, %v276, 0
        %v801 = vsel %vm511, %v277, 0
        %v803 = vsel %vm511, %v279, 0
        %v805 = vsel %vm511, %v280, 0
        %v807 = vsel %vm511, %v282, 0
        %v809 = vsel %vm511, %v283, 0
        %v811 = vsel %vm511, %v285, 0
        %v813 = vsel %vm511, %v286, 0
        %v815 = vsel %vm511, %v288, 0
        %v817 = vsel %vm511, %v289, 0
        %v819 = vsel %vm511, %v291, 0
        %v821 = vsel %vm511, %v292, 0
        %v823 = vsel %vm511, %v294, 0
        %v825 = vsel %vm511, %v295, 0
        %v827 = vsel %vm511, %v297, 0
        %v829 = vsel %vm511, %v298, 0
        %v831 = vsel %vm511, %v300, 0
        %v833 = vsel %vm511, %v301, 0
        %v835 = vsel %vm511, %v303, 0
        %v837 = vsel %vm511, %v304, 0
        %v839 = vsel %vm511, %v306, 0
        %v841 = vsel %vm511, %v307, 0
        %v843 = vsel %vm511, %v309, 0
        %v845 = vsel %vm511, %v310, 0
        %v847 = vsel %vm511, %v312, 0
        %v849 = vsel %vm511, %v313, 0
        %851 = vmatprep.subr.mxu0 0.0
        %852 = vmatpush1.xpose.msra.mxu0 %v755
        %853 = vmatprep.subr.mxu0 0.0
        %854 = vmatpush1.xpose.msra.mxu0 %v757
        %855 = vmatprep.subr.mxu0 0.0
        %856 = vmatpush1.xpose.msra.mxu0 %v759
        %857 = vmatprep.subr.mxu0 0.0
        %858 = vmatpush1.xpose.msra.mxu0 %v761
        %859 = vmatprep.subr.mxu0 0.0
        %860 = vmatpush1.xpose.msra.mxu0 %v763
        %861 = vmatprep.subr.mxu0 0.0
        %862 = vmatpush1.xpose.msra.mxu0 %v765
        %863 = vmatprep.subr.mxu0 0.0
        %864 = vmatpush1.xpose.msra.mxu0 %v767
        %865 = vmatprep.subr.mxu0 0.0
        %866 = vmatpush1.xpose.msra.mxu0 %v769
        %867 = vmatprep.subr.mxu0 0.0
        %868 = vmatpush1.xpose.msra.mxu0 %v771
        %869 = vmatprep.subr.mxu0 0.0
        %870 = vmatpush1.xpose.msra.mxu0 %v773
        %871 = vmatprep.subr.mxu0 0.0
        %872 = vmatpush1.xpose.msra.mxu0 %v775
        %873 = vmatprep.subr.mxu0 0.0
        %874 = vmatpush1.xpose.msra.mxu0 %v777
        %875 = vmatprep.subr.mxu0 0.0
        %876 = vmatpush1.xpose.msra.mxu0 %v779
        %877 = vmatprep.subr.mxu0 0.0
        %878 = vmatpush1.xpose.msra.mxu0 %v781
        %879 = vmatprep.subr.mxu0 0.0
        %880 = vmatpush1.xpose.msra.mxu0 %v783
        %881 = vmatprep.subr.mxu0 0.0
        %882 = vmatpush1.xpose.msra.mxu0 %v785
        %883 = vmatprep.subr.mxu0 0.0
        %884 = vmatpush1.xpose.msra.mxu0 %v787
        %885 = vmatprep.subr.mxu0 0.0
        %886 = vmatpush1.xpose.msra.mxu0 %v789
        %887 = vmatprep.subr.mxu0 0.0
        %888 = vmatpush1.xpose.msra.mxu0 %v791
        %889 = vmatprep.subr.mxu0 0.0
        %890 = vmatpush1.xpose.msra.mxu0 %v793
        %891 = vmatprep.subr.mxu0 0.0
        %892 = vmatpush1.xpose.msra.mxu0 %v795
        %893 = vmatprep.subr.mxu0 0.0
        %894 = vmatpush1.xpose.msra.mxu0 %v797
        %895 = vmatprep.subr.mxu0 0.0
        %896 = vmatpush1.xpose.msra.mxu0 %v799
        %897 = vmatprep.subr.mxu0 0.0
        %898 = vmatpush1.xpose.msra.mxu0 %v801
        %899 = vmatprep.subr.mxu0 0.0
        %900 = vmatpush1.xpose.msra.mxu0 %v803
        %901 = vmatprep.subr.mxu0 0.0
        %902 = vmatpush1.xpose.msra.mxu0 %v805
        %903 = vmatprep.subr.mxu0 0.0
        %904 = vmatpush1.xpose.msra.mxu0 %v807
        %905 = vmatprep.subr.mxu0 0.0
        %906 = vmatpush1.xpose.msra.mxu0 %v809
        %907 = vmatprep.subr.mxu0 0.0
        %908 = vmatpush1.xpose.msra.mxu0 %v811
        %909 = vmatprep.subr.mxu0 0.0
        %910 = vmatpush1.xpose.msra.mxu0 %v813
        %911 = vmatprep.subr.mxu0 0.0
        %912 = vmatpush1.xpose.msra.mxu0 %v815
        %913 = vmatprep.subr.mxu0 0.0
        %914 = vmatpush1.xpose.msra.mxu0 %v817
        %915 = vmatprep.mubr.f32.mxu0 0.0
        %916 = vmatmul.mubr.f32.gmra.mrb[0].mxu0 %v753
        %v917 = vpop.f32.mrb[0].mxu0
        %v918 = vadd.f32 %v678, %v917
        %v919 = vpop.f32.mrb[0].mxu0
        %v920 = vadd.f32 %v680, %v919
        %921 = vdwg.mxu0
        %922 = vmatprep.subr.mxu0 0.0
        %923 = vmatpush1.xpose.msra.mxu0 %v819
        %924 = vmatprep.subr.mxu0 0.0
        %925 = vmatpush1.xpose.msra.mxu0 %v821
        %926 = vmatprep.subr.mxu0 0.0
        %927 = vmatpush1.xpose.msra.mxu0 %v823
        %928 = vmatprep.subr.mxu0 0.0
        %929 = vmatpush1.xpose.msra.mxu0 %v825
        %930 = vmatprep.subr.mxu0 0.0
        %931 = vmatpush1.xpose.msra.mxu0 %v827
        %932 = vmatprep.subr.mxu0 0.0
        %933 = vmatpush1.xpose.msra.mxu0 %v829
        %934 = vmatprep.subr.mxu0 0.0
        %935 = vmatpush1.xpose.msra.mxu0 %v831
        %936 = vmatprep.subr.mxu0 0.0
        %937 = vmatpush1.xpose.msra.mxu0 %v833
        %938 = vmatprep.subr.mxu0 0.0
        %939 = vmatpush1.xpose.msra.mxu0 %v835
        %940 = vmatprep.subr.mxu0 0.0
        %941 = vmatpush1.xpose.msra.mxu0 %v837
        %942 = vmatprep.subr.mxu0 0.0
        %943 = vmatpush1.xpose.msra.mxu0 %v839
        %944 = vmatprep.subr.mxu0 0.0
        %945 = vmatpush1.xpose.msra.mxu0 %v841
        %946 = vmatprep.subr.mxu0 0.0
        %947 = vmatpush1.xpose.msra.mxu0 %v843
        %948 = vmatprep.subr.mxu0 0.0
        %949 = vmatpush1.xpose.msra.mxu0 %v845
        %950 = vmatprep.subr.mxu0 0.0
        %951 = vmatpush1.xpose.msra.mxu0 %v847
        %952 = vmatprep.subr.mxu0 0.0
        %953 = vmatpush1.xpose.msra.mxu0 %v849
        %954 = vmatprep.subr.mxu0 0.0
        %955 = vmatpush1.xpose.msra.mxu0 0.0
        %956 = vmatprep.subr.mxu0 0.0
        %957 = vmatpush1.xpose.msra.mxu0 0.0
        %958 = vmatprep.subr.mxu0 0.0
        %959 = vmatpush1.xpose.msra.mxu0 0.0
        %960 = vmatprep.subr.mxu0 0.0
        %961 = vmatpush1.xpose.msra.mxu0 0.0
        %962 = vmatprep.subr.mxu0 0.0
        %963 = vmatpush1.xpose.msra.mxu0 0.0
        %964 = vmatprep.subr.mxu0 0.0
        %965 = vmatpush1.xpose.msra.mxu0 0.0
        %966 = vmatprep.subr.mxu0 0.0
        %967 = vmatpush1.xpose.msra.mxu0 0.0
        %968 = vmatprep.subr.mxu0 0.0
        %969 = vmatpush1.xpose.msra.mxu0 0.0
        %970 = vmatprep.subr.mxu0 0.0
        %971 = vmatpush1.xpose.msra.mxu0 0.0
        %972 = vmatprep.subr.mxu0 0.0
        %973 = vmatpush1.xpose.msra.mxu0 0.0
        %974 = vmatprep.subr.mxu0 0.0
        %975 = vmatpush1.xpose.msra.mxu0 0.0
        %976 = vmatprep.subr.mxu0 0.0
        %977 = vmatpush1.xpose.msra.mxu0 0.0
        %978 = vmatprep.subr.mxu0 0.0
        %979 = vmatpush1.xpose.msra.mxu0 0.0
        %980 = vmatprep.subr.mxu0 0.0
        %981 = vmatpush1.xpose.msra.mxu0 0.0
        %982 = vmatprep.subr.mxu0 0.0
        %983 = vmatpush1.xpose.msra.mxu0 0.0
        %984 = vmatprep.subr.mxu0 0.0
        %985 = vmatpush1.xpose.msra.mxu0 0.0
        %986 = vmatprep.mubr.f32.mxu0 0.0
        %987 = vmatmul.mubr.f32.gmra.mrb[0].mxu0 %v753
        %v988 = vpop.f32.mrb[0].mxu0
        %v989 = vadd.f32 %v749, %v988
        %v990 = vpop.f32.mrb[0].mxu0
        %991 = vdwg.mxu0
        %vm992 = vcmask 1045504
        %v993 = vrot.slane %v243, 2
        %v994 = vrot.slane %v244, 2
        %v995 = vsel %vm992, %v993, %v994
        %v996 = vrot.slane %v245, 2
        %v997 = vsel %vm992, %v994, %v996
        %v998 = vrot.slane %v246, 2
        %v999 = vrot.slane %v247, 2
        %v1000 = vsel %vm992, %v998, %v999
        %v1001 = vrot.slane %v248, 2
        %v1002 = vsel %vm992, %v999, %v1001
        %v1003 = vrot.slane %v249, 2
        %v1004 = vrot.slane %v250, 2
        %v1005 = vsel %vm992, %v1003, %v1004
        %v1006 = vrot.slane %v251, 2
        %v1007 = vsel %vm992, %v1004, %v1006
        %v1008 = vrot.slane %v252, 2
        %v1009 = vrot.slane %v253, 2
        %v1010 = vsel %vm992, %v1008, %v1009
        %v1011 = vrot.slane %v254, 2
        %v1012 = vsel %vm992, %v1009, %v1011
        %v1013 = vrot.slane %v255, 2
        %v1014 = vrot.slane %v256, 2
        %v1015 = vsel %vm992, %v1013, %v1014
        %v1016 = vrot.slane %v257, 2
        %v1017 = vsel %vm992, %v1014, %v1016
        %v1018 = vrot.slane %v258, 2
        %v1019 = vrot.slane %v259, 2
        %v1020 = vsel %vm992, %v1018, %v1019
        %v1021 = vrot.slane %v260, 2
        %v1022 = vsel %vm992, %v1019, %v1021
        %v1023 = vrot.slane %v261, 2
        %v1024 = vrot.slane %v262, 2
        %v1025 = vsel %vm992, %v1023, %v1024
        %v1026 = vrot.slane %v263, 2
        %v1027 = vsel %vm992, %v1024, %v1026
        %v1028 = vrot.slane %v264, 2
        %v1029 = vrot.slane %v265, 2
        %v1030 = vsel %vm992, %v1028, %v1029
        %v1031 = vrot.slane %v266, 2
        %v1032 = vsel %vm992, %v1029, %v1031
        %v1033 = vrot.slane %v267, 2
        %v1034 = vrot.slane %v268, 2
        %v1035 = vsel %vm992, %v1033, %v1034
        %v1036 = vrot.slane %v269, 2
        %v1037 = vsel %vm992, %v1034, %v1036
        %v1038 = vrot.slane %v270, 2
        %v1039 = vrot.slane %v271, 2
        %v1040 = vsel %vm992, %v1038, %v1039
        %v1041 = vrot.slane %v272, 2
        %v1042 = vsel %vm992, %v1039, %v1041
        %v1043 = vrot.slane %v273, 2
        %v1044 = vrot.slane %v274, 2
        %v1045 = vsel %vm992, %v1043, %v1044
        %v1046 = vrot.slane %v275, 2
        %v1047 = vsel %vm992, %v1044, %v1046
        %v1048 = vrot.slane %v276, 2
        %v1049 = vrot.slane %v277, 2
        %v1050 = vsel %vm992, %v1048, %v1049
        %v1051 = vrot.slane %v278, 2
        %v1052 = vsel %vm992, %v1049, %v1051
        %v1053 = vrot.slane %v279, 2
        %v1054 = vrot.slane %v280, 2
        %v1055 = vsel %vm992, %v1053, %v1054
        %v1056 = vrot.slane %v281, 2
        %v1057 = vsel %vm992, %v1054, %v1056
        %v1058 = vrot.slane %v282, 2
        %v1059 = vrot.slane %v283, 2
        %v1060 = vsel %vm992, %v1058, %v1059
        %v1061 = vrot.slane %v284, 2
        %v1062 = vsel %vm992, %v1059, %v1061
        %v1063 = vrot.slane %v285, 2
        %v1064 = vrot.slane %v286, 2
        %v1065 = vsel %vm992, %v1063, %v1064
        %v1066 = vrot.slane %v287, 2
        %v1067 = vsel %vm992, %v1064, %v1066
        %v1068 = vrot.slane %v288, 2
        %v1069 = vrot.slane %v289, 2
        %v1070 = vsel %vm992, %v1068, %v1069
        %v1071 = vrot.slane %v290, 2
        %v1072 = vsel %vm992, %v1069, %v1071
        %v1073 = vrot.slane %v291, 2
        %v1074 = vrot.slane %v292, 2
        %v1075 = vsel %vm992, %v1073, %v1074
        %v1076 = vrot.slane %v293, 2
        %v1077 = vsel %vm992, %v1074, %v1076
        %v1078 = vrot.slane %v294, 2
        %v1079 = vrot.slane %v295, 2
        %v1080 = vsel %vm992, %v1078, %v1079
        %v1081 = vrot.slane %v296, 2
        %v1082 = vsel %vm992, %v1079, %v1081
        %v1083 = vrot.slane %v297, 2
        %v1084 = vrot.slane %v298, 2
        %v1085 = vsel %vm992, %v1083, %v1084
        %v1086 = vrot.slane %v299, 2
        %v1087 = vsel %vm992, %v1084, %v1086
        %v1088 = vrot.slane %v300, 2
        %v1089 = vrot.slane %v301, 2
        %v1090 = vsel %vm992, %v1088, %v1089
        %v1091 = vrot.slane %v302, 2
        %v1092 = vsel %vm992, %v1089, %v1091
        %v1093 = vrot.slane %v303, 2
        %v1094 = vrot.slane %v304, 2
        %v1095 = vsel %vm992, %v1093, %v1094
        %v1096 = vrot.slane %v305, 2
        %v1097 = vsel %vm992, %v1094, %v1096
        %v1098 = vrot.slane %v306, 2
        %v1099 = vrot.slane %v307, 2
        %v1100 = vsel %vm992, %v1098, %v1099
        %v1101 = vrot.slane %v308, 2
        %v1102 = vsel %vm992, %v1099, %v1101
        %v1103 = vrot.slane %v309, 2
        %v1104 = vrot.slane %v310, 2
        %v1105 = vsel %vm992, %v1103, %v1104
        %v1106 = vrot.slane %v311, 2
        %v1107 = vsel %vm992, %v1104, %v1106
        %v1108 = vrot.slane %v312, 2
        %v1109 = vrot.slane %v313, 2
        %v1110 = vsel %vm992, %v1108, %v1109
        %v1111 = vrot.slane %v314, 2
        %v1112 = vsel %vm992, %v1109, %v1111
        %s1113 = scalar_lea.vmem %s1, 16
        %v1114 = vld [vmem:[%s1113] sm:$0xff]
        %v1116 = vsel %vm511, %v1114, 0
        %v1118 = vsel %vm511, %v995, 0
        %v1120 = vsel %vm511, %v997, 0
        %v1122 = vsel %vm511, %v1000, 0
        %v1124 = vsel %vm511, %v1002, 0
        %v1126 = vsel %vm511, %v1005, 0
        %v1128 = vsel %vm511, %v1007, 0
        %v1130 = vsel %vm511, %v1010, 0
        %v1132 = vsel %vm511, %v1012, 0
        %v1134 = vsel %vm511, %v1015, 0
        %v1136 = vsel %vm511, %v1017, 0
        %v1138 = vsel %vm511, %v1020, 0
        %v1140 = vsel %vm511, %v1022, 0
        %v1142 = vsel %vm511, %v1025, 0
        %v1144 = vsel %vm511, %v1027, 0
        %v1146 = vsel %vm511, %v1030, 0
        %v1148 = vsel %vm511, %v1032, 0
        %v1150 = vsel %vm511, %v1035, 0
        %v1152 = vsel %vm511, %v1037, 0
        %v1154 = vsel %vm511, %v1040, 0
        %v1156 = vsel %vm511, %v1042, 0
        %v1158 = vsel %vm511, %v1045, 0
        %v1160 = vsel %vm511, %v1047, 0
        %v1162 = vsel %vm511, %v1050, 0
        %v1164 = vsel %vm511, %v1052, 0
        %v1166 = vsel %vm511, %v1055, 0
        %v1168 = vsel %vm511, %v1057, 0
        %v1170 = vsel %vm511, %v1060, 0
        %v1172 = vsel %vm511, %v1062, 0
        %v1174 = vsel %vm511, %v1065, 0
        %v1176 = vsel %vm511, %v1067, 0
        %v1178 = vsel %vm511, %v1070, 0
        %v1180 = vsel %vm511, %v1072, 0
        %v1182 = vsel %vm511, %v1075, 0
        %v1184 = vsel %vm511, %v1077, 0
        %v1186 = vsel %vm511, %v1080, 0
        %v1188 = vsel %vm511, %v1082, 0
        %v1190 = vsel %vm511, %v1085, 0
        %v1192 = vsel %vm511, %v1087, 0
        %v1194 = vsel %vm511, %v1090, 0
        %v1196 = vsel %vm511, %v1092, 0
        %v1198 = vsel %vm511, %v1095, 0
        %v1200 = vsel %vm511, %v1097, 0
        %v1202 = vsel %vm511, %v1100, 0
        %v1204 = vsel %vm511, %v1102, 0
        %v1206 = vsel %vm511, %v1105, 0
        %v1208 = vsel %vm511, %v1107, 0
        %v1210 = vsel %vm511, %v1110, 0
        %v1212 = vsel %vm511, %v1112, 0
        %1214 = vmatprep.subr.mxu0 0.0
        %1215 = vmatpush1.xpose.msra.mxu0 %v1118
        %1216 = vmatprep.subr.mxu0 0.0
        %1217 = vmatpush1.xpose.msra.mxu0 %v1120
        %1218 = vmatprep.subr.mxu0 0.0
        %1219 = vmatpush1.xpose.msra.mxu0 %v1122
        %1220 = vmatprep.subr.mxu0 0.0
        %1221 = vmatpush1.xpose.msra.mxu0 %v1124
        %1222 = vmatprep.subr.mxu0 0.0
        %1223 = vmatpush1.xpose.msra.mxu0 %v1126
        %1224 = vmatprep.subr.mxu0 0.0
        %1225 = vmatpush1.xpose.msra.mxu0 %v1128
        %1226 = vmatprep.subr.mxu0 0.0
        %1227 = vmatpush1.xpose.msra.mxu0 %v1130
        %1228 = vmatprep.subr.mxu0 0.0
        %1229 = vmatpush1.xpose.msra.mxu0 %v1132
        %1230 = vmatprep.subr.mxu0 0.0
        %1231 = vmatpush1.xpose.msra.mxu0 %v1134
        %1232 = vmatprep.subr.mxu0 0.0
        %1233 = vmatpush1.xpose.msra.mxu0 %v1136
        %1234 = vmatprep.subr.mxu0 0.0
        %1235 = vmatpush1.xpose.msra.mxu0 %v1138
        %1236 = vmatprep.subr.mxu0 0.0
        %1237 = vmatpush1.xpose.msra.mxu0 %v1140
        %1238 = vmatprep.subr.mxu0 0.0
        %1239 = vmatpush1.xpose.msra.mxu0 %v1142
        %1240 = vmatprep.subr.mxu0 0.0
        %1241 = vmatpush1.xpose.msra.mxu0 %v1144
        %1242 = vmatprep.subr.mxu0 0.0
        %1243 = vmatpush1.xpose.msra.mxu0 %v1146
        %1244 = vmatprep.subr.mxu0 0.0
        %1245 = vmatpush1.xpose.msra.mxu0 %v1148
        %1246 = vmatprep.subr.mxu0 0.0
        %1247 = vmatpush1.xpose.msra.mxu0 %v1150
        %1248 = vmatprep.subr.mxu0 0.0
        %1249 = vmatpush1.xpose.msra.mxu0 %v1152
        %1250 = vmatprep.subr.mxu0 0.0
        %1251 = vmatpush1.xpose.msra.mxu0 %v1154
        %1252 = vmatprep.subr.mxu0 0.0
        %1253 = vmatpush1.xpose.msra.mxu0 %v1156
        %1254 = vmatprep.subr.mxu0 0.0
        %1255 = vmatpush1.xpose.msra.mxu0 %v1158
        %1256 = vmatprep.subr.mxu0 0.0
        %1257 = vmatpush1.xpose.msra.mxu0 %v1160
        %1258 = vmatprep.subr.mxu0 0.0
        %1259 = vmatpush1.xpose.msra.mxu0 %v1162
        %1260 = vmatprep.subr.mxu0 0.0
        %1261 = vmatpush1.xpose.msra.mxu0 %v1164
        %1262 = vmatprep.subr.mxu0 0.0
        %1263 = vmatpush1.xpose.msra.mxu0 %v1166
        %1264 = vmatprep.subr.mxu0 0.0
        %1265 = vmatpush1.xpose.msra.mxu0 %v1168
        %1266 = vmatprep.subr.mxu0 0.0
        %1267 = vmatpush1.xpose.msra.mxu0 %v1170
        %1268 = vmatprep.subr.mxu0 0.0
        %1269 = vmatpush1.xpose.msra.mxu0 %v1172
        %1270 = vmatprep.subr.mxu0 0.0
        %1271 = vmatpush1.xpose.msra.mxu0 %v1174
        %1272 = vmatprep.subr.mxu0 0.0
        %1273 = vmatpush1.xpose.msra.mxu0 %v1176
        %1274 = vmatprep.subr.mxu0 0.0
        %1275 = vmatpush1.xpose.msra.mxu0 %v1178
        %1276 = vmatprep.subr.mxu0 0.0
        %1277 = vmatpush1.xpose.msra.mxu0 %v1180
        %1278 = vmatprep.mubr.f32.mxu0 0.0
        %1279 = vmatmul.mubr.f32.gmra.mrb[0].mxu0 %v1116
        %v1280 = vpop.f32.mrb[0].mxu0
        %v1281 = vadd.f32 0.0, %v1280
        %v1282 = vpop.f32.mrb[0].mxu0
        %v1283 = vadd.f32 0.0, %v1282
        %1284 = vdwg.mxu0
        %1285 = vmatprep.subr.mxu0 0.0
        %1286 = vmatpush1.xpose.msra.mxu0 %v1182
        %1287 = vmatprep.subr.mxu0 0.0
        %1288 = vmatpush1.xpose.msra.mxu0 %v1184
        %1289 = vmatprep.subr.mxu0 0.0
        %1290 = vmatpush1.xpose.msra.mxu0 %v1186
        %1291 = vmatprep.subr.mxu0 0.0
        %1292 = vmatpush1.xpose.msra.mxu0 %v1188
        %1293 = vmatprep.subr.mxu0 0.0
        %1294 = vmatpush1.xpose.msra.mxu0 %v1190
        %1295 = vmatprep.subr.mxu0 0.0
        %1296 = vmatpush1.xpose.msra.mxu0 %v1192
        %1297 = vmatprep.subr.mxu0 0.0
        %1298 = vmatpush1.xpose.msra.mxu0 %v1194
        %1299 = vmatprep.subr.mxu0 0.0
        %1300 = vmatpush1.xpose.msra.mxu0 %v1196
        %1301 = vmatprep.subr.mxu0 0.0
        %1302 = vmatpush1.xpose.msra.mxu0 %v1198
        %1303 = vmatprep.subr.mxu0 0.0
        %1304 = vmatpush1.xpose.msra.mxu0 %v1200
        %1305 = vmatprep.subr.mxu0 0.0
        %1306 = vmatpush1.xpose.msra.mxu0 %v1202
        %1307 = vmatprep.subr.mxu0 0.0
        %1308 = vmatpush1.xpose.msra.mxu0 %v1204
        %1309 = vmatprep.subr.mxu0 0.0
        %1310 = vmatpush1.xpose.msra.mxu0 %v1206
        %1311 = vmatprep.subr.mxu0 0.0
        %1312 = vmatpush1.xpose.msra.mxu0 %v1208
        %1313 = vmatprep.subr.mxu0 0.0
        %1314 = vmatpush1.xpose.msra.mxu0 %v1210
        %1315 = vmatprep.subr.mxu0 0.0
        %1316 = vmatpush1.xpose.msra.mxu0 %v1212
        %1317 = vmatprep.subr.mxu0 0.0
        %1318 = vmatpush1.xpose.msra.mxu0 0.0
        %1319 = vmatprep.subr.mxu0 0.0
        %1320 = vmatpush1.xpose.msra.mxu0 0.0
        %1321 = vmatprep.subr.mxu0 0.0
        %1322 = vmatpush1.xpose.msra.mxu0 0.0
        %1323 = vmatprep.subr.mxu0 0.0
        %1324 = vmatpush1.xpose.msra.mxu0 0.0
        %1325 = vmatprep.subr.mxu0 0.0
        %1326 = vmatpush1.xpose.msra.mxu0 0.0
        %1327 = vmatprep.subr.mxu0 0.0
        %1328 = vmatpush1.xpose.msra.mxu0 0.0
        %1329 = vmatprep.subr.mxu0 0.0
        %1330 = vmatpush1.xpose.msra.mxu0 0.0
        %1331 = vmatprep.subr.mxu0 0.0
        %1332 = vmatpush1.xpose.msra.mxu0 0.0
        %1333 = vmatprep.subr.mxu0 0.0
        %1334 = vmatpush1.xpose.msra.mxu0 0.0
        %1335 = vmatprep.subr.mxu0 0.0
        %1336 = vmatpush1.xpose.msra.mxu0 0.0
        %1337 = vmatprep.subr.mxu0 0.0
        %1338 = vmatpush1.xpose.msra.mxu0 0.0
        %1339 = vmatprep.subr.mxu0 0.0
        %1340 = vmatpush1.xpose.msra.mxu0 0.0
        %1341 = vmatprep.subr.mxu0 0.0
        %1342 = vmatpush1.xpose.msra.mxu0 0.0
        %1343 = vmatprep.subr.mxu0 0.0
        %1344 = vmatpush1.xpose.msra.mxu0 0.0
        %1345 = vmatprep.subr.mxu0 0.0
        %1346 = vmatpush1.xpose.msra.mxu0 0.0
        %1347 = vmatprep.subr.mxu0 0.0
        %1348 = vmatpush1.xpose.msra.mxu0 0.0
        %1349 = vmatprep.mubr.f32.mxu0 0.0
        %1350 = vmatmul.mubr.f32.gmra.mrb[0].mxu0 %v1116
        %v1351 = vpop.f32.mrb[0].mxu0
        %v1352 = vadd.f32 0.0, %v1351
        %v1353 = vpop.f32.mrb[0].mxu0
        %1354 = vdwg.mxu0
        %v1355 = vadd.f32 %v918, %v1281
        %v1356 = vadd.f32 %v920, %v1283
        %v1357 = vadd.f32 %v989, %v1352
        %vm1358 = vcmp.ge.f32.partialorder %v1355, 0.0
        %vm1359 = vcmp.ge.f32.partialorder %v1356, 0.0
        %vm1360 = vcmp.ge.f32.partialorder %v1357, 0.0
        %v1361 = vmul.f32 %v1355, 0.1
        %v1362 = vmul.f32 %v1356, 0.1
        %v1363 = vmul.f32 %v1357, 0.1
        %v1364 = vsel %vm1358, %v1355, %v1361
        %v1365 = vsel %vm1359, %v1356, %v1362
        %v1366 = vsel %vm1360, %v1357, %v1363
        %v1367 = vld [vmem:[%s2] sm:$0xff]
        %v1368 = vld [vmem:[%s2 + $0x8] sm:$0xff]
        %v1369 = vld [vmem:[%s2 + $0x10] sm:$0xff]
        %vm1370 = vcmask 64512
        %v1372 = vsel %vm1370, %v1367, 0
        %v1375 = vsel %vm1370, %v1368, 0
        %v1378 = vsel %vm1370, %v1369, 0
        %1380 = vmatprep.subr.mxu0 %v1365
        %1381 = vmatpush1.msra.mxu0 %v1364
        %1382 = vmatprep.subr.mxu0 0.0
        %1383 = vmatpush1.msra.mxu0 0.0
        %1384 = vmatprep.subr.mxu0 0.0
        %1385 = vmatpush1.msra.mxu0 0.0
        %1386 = vmatprep.subr.mxu0 0.0
        %1387 = vmatpush1.msra.mxu0 0.0
        %1388 = vmatprep.subr.mxu0 0.0
        %1389 = vmatpush1.msra.mxu0 0.0
        %1390 = vmatprep.subr.mxu0 0.0
        %1391 = vmatpush1.msra.mxu0 0.0
        %1392 = vmatprep.subr.mxu0 0.0
        %1393 = vmatpush1.msra.mxu0 0.0
        %1394 = vmatprep.subr.mxu0 0.0
        %1395 = vmatpush1.msra.mxu0 0.0
        %1396 = vmatprep.subr.mxu0 0.0
        %1397 = vmatpush1.msra.mxu0 0.0
        %1398 = vmatprep.subr.mxu0 0.0
        %1399 = vmatpush1.msra.mxu0 0.0
        %1400 = vmatprep.subr.mxu0 0.0
        %1401 = vmatpush1.msra.mxu0 0.0
        %1402 = vmatprep.subr.mxu0 0.0
        %1403 = vmatpush1.msra.mxu0 0.0
        %1404 = vmatprep.subr.mxu0 0.0
        %1405 = vmatpush1.msra.mxu0 0.0
        %1406 = vmatprep.subr.mxu0 0.0
        %1407 = vmatpush1.msra.mxu0 0.0
        %1408 = vmatprep.subr.mxu0 0.0
        %1409 = vmatpush1.msra.mxu0 0.0
        %1410 = vmatprep.subr.mxu0 0.0
        %1411 = vmatpush1.msra.mxu0 0.0
        %1412 = vmatprep.subr.mxu0 0.0
        %1413 = vmatpush1.msra.mxu0 0.0
        %1414 = vmatprep.subr.mxu0 0.0
        %1415 = vmatpush1.msra.mxu0 0.0
        %1416 = vmatprep.subr.mxu0 0.0
        %1417 = vmatpush1.msra.mxu0 0.0
        %1418 = vmatprep.subr.mxu0 0.0
        %1419 = vmatpush1.msra.mxu0 0.0
        %1420 = vmatprep.subr.mxu0 0.0
        %1421 = vmatpush1.msra.mxu0 0.0
        %1422 = vmatprep.subr.mxu0 0.0
        %1423 = vmatpush1.msra.mxu0 0.0
        %1424 = vmatprep.subr.mxu0 0.0
        %1425 = vmatpush1.msra.mxu0 0.0
        %1426 = vmatprep.subr.mxu0 0.0
        %1427 = vmatpush1.msra.mxu0 0.0
        %1428 = vmatprep.subr.mxu0 0.0
        %1429 = vmatpush1.msra.mxu0 0.0
        %1430 = vmatprep.subr.mxu0 0.0
        %1431 = vmatpush1.msra.mxu0 0.0
        %1432 = vmatprep.subr.mxu0 0.0
        %1433 = vmatpush1.msra.mxu0 0.0
        %1434 = vmatprep.subr.mxu0 0.0
        %1435 = vmatpush1.msra.mxu0 0.0
        %1436 = vmatprep.subr.mxu0 0.0
        %1437 = vmatpush1.msra.mxu0 0.0
        %1438 = vmatprep.subr.mxu0 0.0
        %1439 = vmatpush1.msra.mxu0 0.0
        %1440 = vmatprep.subr.mxu0 0.0
        %1441 = vmatpush1.msra.mxu0 0.0
        %1442 = vmatprep.subr.mxu0 0.0
        %1443 = vmatpush1.msra.mxu0 0.0
        %1444 = vmatprep.mubr.f32.mxu0 0.0
        %1445 = vmatmul.mubr.f32.gmra.mrb[0].mxu0 %v1372
        %v1446 = vpop.f32.mrb[0].mxu0
        %v1447 = vadd.f32 0.0, %v1446
        %v1448 = vpop.f32.mrb[0].mxu0
        %v1449 = vadd.f32 0.0, %v1448
        %1450 = vmatprep.mubr.f32.mxu0 0.0
        %1451 = vmatmul.mubr.f32.gmra.mrb[0].mxu0 %v1375
        %v1452 = vpop.f32.mrb[0].mxu0
        %v1453 = vadd.f32 0.0, %v1452
        %v1454 = vpop.f32.mrb[0].mxu0
        %v1455 = vadd.f32 0.0, %v1454
        %1456 = vmatprep.mubr.f32.mxu0 0.0
        %1457 = vmatmul.mubr.f32.gmra.mrb[0].mxu0 %v1378
        %v1458 = vpop.f32.mrb[0].mxu0
        %v1459 = vadd.f32 0.0, %v1458
        %v1460 = vpop.f32.mrb[0].mxu0
        %v1461 = vadd.f32 0.0, %v1460
        %1462 = vdwg.mxu0
        %1463 = vmatprep.subr.mxu0 0.0
        %1464 = vmatpush1.msra.mxu0 %v1366
        %1465 = vmatprep.subr.mxu0 0.0
        %1466 = vmatpush1.msra.mxu0 0.0
        %1467 = vmatprep.subr.mxu0 0.0
        %1468 = vmatpush1.msra.mxu0 0.0
        %1469 = vmatprep.subr.mxu0 0.0
        %1470 = vmatpush1.msra.mxu0 0.0
        %1471 = vmatprep.subr.mxu0 0.0
        %1472 = vmatpush1.msra.mxu0 0.0
        %1473 = vmatprep.subr.mxu0 0.0
        %1474 = vmatpush1.msra.mxu0 0.0
        %1475 = vmatprep.subr.mxu0 0.0
        %1476 = vmatpush1.msra.mxu0 0.0
        %1477 = vmatprep.subr.mxu0 0.0
        %1478 = vmatpush1.msra.mxu0 0.0
        %1479 = vmatprep.subr.mxu0 0.0
        %1480 = vmatpush1.msra.mxu0 0.0
        %1481 = vmatprep.subr.mxu0 0.0
        %1482 = vmatpush1.msra.mxu0 0.0
        %1483 = vmatprep.subr.mxu0 0.0
        %1484 = vmatpush1.msra.mxu0 0.0
        %1485 = vmatprep.subr.mxu0 0.0
        %1486 = vmatpush1.msra.mxu0 0.0
        %1487 = vmatprep.subr.mxu0 0.0
        %1488 = vmatpush1.msra.mxu0 0.0
        %1489 = vmatprep.subr.mxu0 0.0
        %1490 = vmatpush1.msra.mxu0 0.0
        %1491 = vmatprep.subr.mxu0 0.0
        %1492 = vmatpush1.msra.mxu0 0.0
        %1493 = vmatprep.subr.mxu0 0.0
        %1494 = vmatpush1.msra.mxu0 0.0
        %1495 = vmatprep.subr.mxu0 0.0
        %1496 = vmatpush1.msra.mxu0 0.0
        %1497 = vmatprep.subr.mxu0 0.0
        %1498 = vmatpush1.msra.mxu0 0.0
        %1499 = vmatprep.subr.mxu0 0.0
        %1500 = vmatpush1.msra.mxu0 0.0
        %1501 = vmatprep.subr.mxu0 0.0
        %1502 = vmatpush1.msra.mxu0 0.0
        %1503 = vmatprep.subr.mxu0 0.0
        %1504 = vmatpush1.msra.mxu0 0.0
        %1505 = vmatprep.subr.mxu0 0.0
        %1506 = vmatpush1.msra.mxu0 0.0
        %1507 = vmatprep.subr.mxu0 0.0
        %1508 = vmatpush1.msra.mxu0 0.0
        %1509 = vmatprep.subr.mxu0 0.0
        %1510 = vmatpush1.msra.mxu0 0.0
        %1511 = vmatprep.subr.mxu0 0.0
        %1512 = vmatpush1.msra.mxu0 0.0
        %1513 = vmatprep.subr.mxu0 0.0
        %1514 = vmatpush1.msra.mxu0 0.0
        %1515 = vmatprep.subr.mxu0 0.0
        %1516 = vmatpush1.msra.mxu0 0.0
        %1517 = vmatprep.subr.mxu0 0.0
        %1518 = vmatpush1.msra.mxu0 0.0
        %1519 = vmatprep.subr.mxu0 0.0
        %1520 = vmatpush1.msra.mxu0 0.0
        %1521 = vmatprep.subr.mxu0 0.0
        %1522 = vmatpush1.msra.mxu0 0.0
        %1523 = vmatprep.subr.mxu0 0.0
        %1524 = vmatpush1.msra.mxu0 0.0
        %1525 = vmatprep.subr.mxu0 0.0
        %1526 = vmatpush1.msra.mxu0 0.0
        %1527 = vmatprep.mubr.f32.mxu0 0.0
        %1528 = vmatmul.mubr.f32.gmra.mrb[0].mxu0 %v1372
        %v1529 = vpop.f32.mrb[0].mxu0
        %v1530 = vadd.f32 0.0, %v1529
        %v1531 = vpop.f32.mrb[0].mxu0
        %1532 = vmatprep.mubr.f32.mxu0 0.0
        %1533 = vmatmul.mubr.f32.gmra.mrb[0].mxu0 %v1375
        %v1534 = vpop.f32.mrb[0].mxu0
        %v1535 = vadd.f32 0.0, %v1534
        %v1536 = vpop.f32.mrb[0].mxu0
        %1537 = vmatprep.mubr.f32.mxu0 0.0
        %1538 = vmatmul.mubr.f32.gmra.mrb[0].mxu0 %v1378
        %v1539 = vpop.f32.mrb[0].mxu0
        %v1540 = vadd.f32 0.0, %v1539
        %v1541 = vpop.f32.mrb[0].mxu0
        %1542 = vdwg.mxu0
        %vm1543 = vcmp.ge.f32.partialorder %v1447, 0.0
        %vm1544 = vcmp.ge.f32.partialorder %v1449, 0.0
        %vm1545 = vcmp.ge.f32.partialorder %v1530, 0.0
        %vm1546 = vcmp.ge.f32.partialorder %v1453, 0.0
        %vm1547 = vcmp.ge.f32.partialorder %v1455, 0.0
        %vm1548 = vcmp.ge.f32.partialorder %v1535, 0.0
        %vm1549 = vcmp.ge.f32.partialorder %v1459, 0.0
        %vm1550 = vcmp.ge.f32.partialorder %v1461, 0.0
        %vm1551 = vcmp.ge.f32.partialorder %v1540, 0.0
        %v1552 = vmul.f32 %v1447, 0.1
        %v1553 = vmul.f32 %v1449, 0.1
        %v1554 = vmul.f32 %v1530, 0.1
        %v1555 = vmul.f32 %v1453, 0.1
        %v1556 = vmul.f32 %v1455, 0.1
        %v1557 = vmul.f32 %v1535, 0.1
        %v1558 = vmul.f32 %v1459, 0.1
        %v1559 = vmul.f32 %v1461, 0.1
        %v1560 = vmul.f32 %v1540, 0.1
        %v1561 = vsel %vm1543, %v1447, %v1552
        %v1562 = vsel %vm1544, %v1449, %v1553
        %v1563 = vsel %vm1545, %v1530, %v1554
        %v1564 = vsel %vm1546, %v1453, %v1555
        %v1565 = vsel %vm1547, %v1455, %v1556
        %v1566 = vsel %vm1548, %v1535, %v1557
        %v1567 = vsel %vm1549, %v1459, %v1558
        %v1568 = vsel %vm1550, %v1461, %v1559
        %v1569 = vsel %vm1551, %v1540, %v1560
        %1570 = vst [vmem:[%s162] sm:$0xff] %v1561
        %1571 = vst [vmem:[%s162 + $0x8] sm:$0xff] %v1562
        %1572 = vst [vmem:[%s162 + $0x10] sm:$0xff] %v1563
        %1573 = vst [vmem:[%s162 + $0x18] sm:$0xff] %v1564
        %1574 = vst [vmem:[%s162 + $0x20] sm:$0xff] %v1565
        %1575 = vst [vmem:[%s162 + $0x28] sm:$0xff] %v1566
        %1576 = vst [vmem:[%s162 + $0x30] sm:$0xff] %v1567
        %1577 = vst [vmem:[%s162 + $0x38] sm:$0xff] %v1568
        %1578 = vst [vmem:[%s162 + $0x40] sm:$0xff] %v1569
        %s1579 = sand.u32 %s90, 1
        %s1580 = sand.u32 %s90, 1
        %s1581 = smul.addr %s1580, 72
        %s1582 = scalar_lea.vmem [#allocation2], %s1581
        // Predicated region
        $region33: #{epiconv_forward.1} parent=31 // pred_check
          %p1583 = pneg %p100
        $region34: #{epiconv_forward.1} parent=31 // pred_check_branch
          %1585 = sbr.rel (%p1583) target = $region36
        $region35: #{epiconv_forward.1} parent=31 // pred_region
          %s1586 = smul.u32 3, %s14
          %s1587 = smul.addr %s1586, 8
          %s1588 = scalar_lea.vmem %s3, %s1587
          // Predicated region
          $region37: #{epiconv_forward.1} parent=35 // pred_check
            _
          $region38: #{epiconv_forward.1} parent=35 // pred_check_branch
            %1590 = sbr.rel (0) target = $region40
          $region39: #{epiconv_forward.1} parent=35 // pred_region
            // Predicated region
            $region41: #{epiconv_forward.1} parent=39 // pred_check
              _
            $region42: #{epiconv_forward.1} parent=39 // pred_check_branch
              %1592 = sbr.rel (0) target = $region44
            $region43: #{epiconv_forward.1} parent=39 // pred_region
              loop: start=0, step=1, limit=1
              $region45: #{epiconv_forward.1} parent=43 // loop_pre_header
                _
              $region46: #{epiconv_forward.1} parent=43 // loop_header
                %s1594 = sphi 0, %s1598
                %p1595 = scmp.ge.s32.totalorder %s1594, 1
                %s1599 = sphi %s1582, %s1582
                %s1600 = sphi %s1588, %s1588
              $region47: #{epiconv_forward.1} parent=43 // loop_header_branch
                %1597 = sbr.rel (%p1595) target = $region51
              $region48: #{epiconv_forward.1} parent=43 // loop_body
                %v1601 = vld [vmem:[%s1599] sm:$0xff]
                %1602 = vst [vmem:[%s1600] sm:$0xff] %v1601
                %v1603 = vld [vmem:[%s1599 + $0x8] sm:$0xff]
                %1604 = vst [vmem:[%s1600 + $0x8] sm:$0xff] %v1603
                %v1605 = vld [vmem:[%s1599 + $0x10] sm:$0xff]
                %1606 = vst [vmem:[%s1600 + $0x10] sm:$0xff] %v1605
                %v1607 = vld [vmem:[%s1599 + $0x18] sm:$0xff]
                %1608 = vst [vmem:[%s1600 + $0x30] sm:$0xff] %v1607
                %v1609 = vld [vmem:[%s1599 + $0x20] sm:$0xff]
                %1610 = vst [vmem:[%s1600 + $0x38] sm:$0xff] %v1609
                %v1611 = vld [vmem:[%s1599 + $0x28] sm:$0xff]
                %1612 = vst [vmem:[%s1600 + $0x40] sm:$0xff] %v1611
                %v1613 = vld [vmem:[%s1599 + $0x30] sm:$0xff]
                %1614 = vst [vmem:[%s1600 + $0x60] sm:$0xff] %v1613
                %v1615 = vld [vmem:[%s1599 + $0x38] sm:$0xff]
                %1616 = vst [vmem:[%s1600 + $0x68] sm:$0xff] %v1615
                %v1617 = vld [vmem:[%s1599 + $0x40] sm:$0xff]
                %1618 = vst [vmem:[%s1600 + $0x70] sm:$0xff] %v1617
              $region49: #{epiconv_forward.1} parent=43 // loop_footer
                %s1598 = sadd.s32 1, %s1594
              $region50: #{epiconv_forward.1} parent=43 // loop_footer_branch
                %1593 = sbr.rel target = $region46
              $region51: #{epiconv_forward.1} parent=43 // loop_exit
                _
            $region44: #{epiconv_forward.1} parent=39 // pred_fallthru
              _
            // Predicated region
            $region52: #{epiconv_forward.1} parent=39 // pred_check
              _
            $region53: #{epiconv_forward.1} parent=39 // pred_check_branch
              %1620 = sbr.rel target = $region55
            $region54: #{epiconv_forward.1} parent=39 // pred_region
              _
            $region55: #{epiconv_forward.1} parent=39 // pred_fallthru
              _
          $region40: #{epiconv_forward.1} parent=35 // pred_fallthru
            _
          %1621 = vnop
        $region36: #{epiconv_forward.1} parent=31 // pred_fallthru
          _
      $region32: #{epiconv_forward.1} parent=5 // pred_fallthru
        _
      %p1622 = scmp.le.s32.totalorder 2, %s9
      // Predicated region
      $region56: #{epiconv_forward.1} parent=5 // pred_check
        %p1623 = pneg %p1622
      $region57: #{epiconv_forward.1} parent=5 // pred_check_branch
        %1625 = sbr.rel (%p1623) target = $region59
      $region58: #{epiconv_forward.1} parent=5 // pred_region
        %s1626 = ssub.s32 %s9, 2
        // Predicated region
        $region60: #{epiconv_forward.1} parent=58 // pred_check
          %p1627 = pneg %p106
        $region61: #{epiconv_forward.1} parent=58 // pred_check_branch
          %1629 = sbr.rel (%p1627) target = $region63
        $region62: #{epiconv_forward.1} parent=58 // pred_region
          %s1630 = sand.u32 %s91, 1
          %s1631 = sand.u32 %s91, 1
          %s1632 = smul.addr %s1631, 72
          %s1633 = scalar_lea.vmem [#allocation2], %s1632
        $region63: #{epiconv_forward.1} parent=58 // pred_fallthru
          _
      $region59: #{epiconv_forward.1} parent=5 // pred_fallthru
        _
    $region6: #{epiconv_forward.1} parent=1 // loop_footer
      %s13 = sadd.s32 1, %s9
    $region7: #{epiconv_forward.1} parent=1 // loop_footer_branch
      %8 = sbr.rel target = $region3
    $region8: #{epiconv_forward.1} parent=1 // loop_exit
      _

</llo_original>
